<compile_context>
chip_gen: v7x
topology: tpu7x:2x2x1
jax: 0.10.0
libtpu: 0.0.40
codegen_flags: <defaults>
</compile_context>

<pallas_src>
import numpy as np
import jax
import jax.numpy as jnp
from jax.experimental import pallas as pl
from jax.experimental.pallas import tpu as pltpu


def _round_up(v, m):
    return (v + m - 1) // m * m


# ---------------------------------------------------------------------------
# Wrapper-built constants (parameter-only prep, done once outside the kernel)
# ---------------------------------------------------------------------------

def _toeplitz(w_hwio, in_width, out_width, stride, pad, tap_rows):
    """(Kh,Kw,Ci,Co) conv weight -> (Kh*tap_rows, out_width*Co) block-Toeplitz.

    The W-direction *padding* is folded in here (taps outside [0, in_width)
    are dropped) and each ky tap block is zero-row padded to `tap_rows` so the
    in-kernel window concat joins 128-aligned blocks.
    """
    kh, kw, ci, co = w_hwio.shape
    sel = np.zeros((kw, in_width, out_width), np.float32)
    for kx in range(kw):
        for wo in range(out_width):
            xi = wo * stride + kx - pad
            if 0 <= xi < in_width:
                sel[kx, xi, wo] = 1.0
    t = jnp.einsum("kxw,hkio->hxiwo", jnp.asarray(sel),
                   w_hwio.astype(jnp.float32))
    t = t.reshape(kh, in_width * ci, out_width * co)
    if tap_rows > in_width * ci:
        t = jnp.pad(t, ((0, 0), (0, tap_rows - in_width * ci), (0, 0)))
    return t.reshape(kh * tap_rows, out_width * co)


def _stripe(groups, cout):
    """(groups*cout, cout) channel-fold matrix: F[g*cout + c, c] = 1."""
    return np.tile(np.eye(cout, dtype=np.float32), (groups, 1))


def _block_diag(a, b):
    ra, ca = a.shape
    rb, cb = b.shape
    m = np.zeros((ra + rb, ca + cb), np.float32)
    m[:ra, :ca] = a
    m[ra:, ca:] = b
    return m


def _pool_col_deinterleave(wc2, wpo, cout):
    """(wc2*cout, 2*wpo*cout) even-W-column selectors writing the lo / hi
    halves of a packed 2*wpo*cout output row."""
    dlo = np.zeros((wc2 * cout, 2 * wpo * cout), np.float32)
    dhi = np.zeros((wc2 * cout, 2 * wpo * cout), np.float32)
    for wo in range(wpo):
        for c in range(cout):
            dlo[2 * wo * cout + c, wo * cout + c] = 1.0
            dhi[2 * wo * cout + c, wpo * cout + wo * cout + c] = 1.0
    return dlo, dhi


def _pool_row_select(n, hc2, hpo):
    """(n*hpo//2, n*hc2) row selectors: packed output row (b, j) takes pooled
    rows 2j (lo half) and 2j+1 (hi half), i.e. 3x3-max rows 4j and 4j+2."""
    hp2 = hpo // 2
    slo = np.zeros((n * hp2, n * hc2), np.float32)
    shi = np.zeros((n * hp2, n * hc2), np.float32)
    for b in range(n):
        for j in range(hp2):
            slo[b * hp2 + j, b * hc2 + 4 * j] = 1.0
            shi[b * hp2 + j, b * hc2 + 4 * j + 2] = 1.0
    return slo, shi


# ---------------------------------------------------------------------------
# In-kernel helpers
# ---------------------------------------------------------------------------

def _lrelu(v):
    return jnp.where(v >= 0, v, 0.01 * v)


def _local_row(shape, rows_per_batch):
    r = jax.lax.broadcasted_iota(jnp.int32, shape, 0)
    if rows_per_batch & (rows_per_batch - 1) == 0:
        return jnp.bitwise_and(r, rows_per_batch - 1)
    return r % rows_per_batch


def _conv_window(a, kh, pad, rows_per_batch):
    """a: (N*rows, Ltap) folded activation -> (N*rows, kh*Ltap) row window.

    Tap ky holds rows shifted by (ky - pad), zeroed where outside the batch's
    row range, built with sublane rolls + masks (XLU); the concat joins
    Ltap-aligned lane blocks.
    """
    nrows = a.shape[0]
    li = _local_row(a.shape, rows_per_batch)
    parts = []
    for ky in range(kh):
        shift = pad - ky
        if shift == 0:
            parts.append(a)
            continue
        rolled = pltpu.roll(a, shift % nrows, axis=0)
        src = li - shift
        parts.append(jnp.where((src >= 0) & (src < rows_per_batch), rolled, 0.0))
    return jnp.concatenate(parts, axis=1) if kh > 1 else parts[0]


def _batchnorm(y, f_ref, ft_ref, g_ref, be_ref, count):
    """Train-mode BatchNorm on a folded (rows, Wgroups*C) tensor.  Channel
    fold (y @ F) and unfold (scale @ F^T) are constant matmuls on the MXU."""
    inv = jnp.float32(1.0 / count)
    c1 = jnp.sum(jnp.dot(y, f_ref[...], preferred_element_type=jnp.float32),
                 axis=0, keepdims=True)
    c2 = jnp.sum(jnp.dot(y * y, f_ref[...], preferred_element_type=jnp.float32),
                 axis=0, keepdims=True)
    mean = c1 * inv
    var = jnp.maximum(c2 * inv - mean * mean, 0.0)   # one-pass var, clamped
    scale = g_ref[...] * jax.lax.rsqrt(var + 1e-5)
    shift = be_ref[...] - mean * scale
    scale_l = jnp.dot(scale, ft_ref[...], preferred_element_type=jnp.float32)
    shift_l = jnp.dot(shift, ft_ref[...], preferred_element_type=jnp.float32)
    return y * scale_l + shift_l


# ---------------------------------------------------------------------------
# Forward pass
# ---------------------------------------------------------------------------

def resblock_forward(x_nchw, params, *, kernel_size, padding, stride=1):
    N, Cin, H, W = x_nchw.shape
    Cout = params["w1"].shape[-1]
    K, pad = kernel_size, padding
    use_proj = (stride != 1) or (Cin != Cout)
    if stride != 1:
        # TODO(synk): stride != 1 needs strided row windows (space-to-depth
        # repacked input); not implemented in this kernel.
        raise NotImplementedError("stride != 1 ResBlock not supported")
    assert 2 * pad == K - 1, "conv1/conv2 must be 'same' convs (2*pad == K-1)"

    Hc1, Wc1 = H, W            # conv1 output (stride 1, same padding)
    Hc2, Wc2 = H, W            # conv2 output
    Hs, Ws = H, W              # shortcut output
    Hpo = (Hc2 - 1) // 2 + 1   # maxpool 3x3/s2/p1 output
    Wpo = (Wc2 - 1) // 2 + 1
    assert Hpo % 2 == 0, "TODO(synk): odd pooled height needs another packing"
    L1 = Wc1 * Cout
    L2 = Wc2 * Cout
    LIN = _round_up(W * Cin, 128)
    NR = N * H
    count1 = N * Hc1 * Wc1
    count2 = N * Hc2 * Wc2
    f32 = jnp.float32

    # ---- input: NCHW -> folded, lane-padded (N*H, LIN) ----
    xf = jnp.transpose(x_nchw, (0, 2, 3, 1)).reshape(NR, W * Cin).astype(f32)
    if LIN > W * Cin:
        xf = jnp.pad(xf, ((0, 0), (0, LIN - W * Cin)))

    # ---- wrapper-built constants ----
    t1 = _toeplitz(params["w1"], W, Wc1, 1, pad, LIN)           # (K*LIN, L1)
    t2 = _toeplitz(params["w2"], Wc1, Wc2, 1, pad, L1)          # (K*L1, L2)
    b1t = jnp.tile(params["b1"].reshape(1, Cout).astype(f32), (1, Wc1))
    b2t = jnp.tile(params["b2"].reshape(1, Cout).astype(f32), (1, Wc2))
    if use_proj:
        # Fuse conv1 + 1x1 shortcut into one matmul: [conv1 | shortcut],
        # filling 256 MXU output lanes.  The shortcut reads the ky == pad tap.
        ts = _toeplitz(params["ws"], W, Ws, 1, 0, LIN)           # (LIN, Ws*Cout)
        tsf = jnp.zeros((K * LIN, Ws * Cout), f32)
        tsf = tsf.at[pad * LIN:(pad + 1) * LIN, :].set(ts)
        t1f = jnp.concatenate([t1, tsf], axis=1)                 # (K*LIN, L1+Ws*Cout)
        b1f = jnp.concatenate(
            [b1t, jnp.tile(params["bs"].reshape(1, Cout).astype(f32), (1, Ws))],
            axis=1)
        F1 = _block_diag(_stripe(Wc1, Cout), _stripe(Ws, Cout))
        g1f = jnp.concatenate([params["g1"].reshape(1, Cout),
                               params["gs"].reshape(1, Cout)], axis=1).astype(f32)
        be1f = jnp.concatenate([params["be1"].reshape(1, Cout),
                                params["bes"].reshape(1, Cout)], axis=1).astype(f32)
    else:
        t1f, b1f = t1, b1t
        F1 = _stripe(Wc1, Cout)
        g1f = params["g1"].reshape(1, Cout).astype(f32)
        be1f = params["be1"].reshape(1, Cout).astype(f32)
    F2 = _stripe(Wc2, Cout)
    dlo, dhi = _pool_col_deinterleave(Wc2, Wpo, Cout)
    slo, shi = _pool_row_select(N, Hc2, Hpo)

    def kernel(x_ref, t1_ref, b1_ref, f1_ref, f1t_ref, g1_ref, be1_ref,
               t2_ref, b2_ref, f2_ref, f2t_ref, g2_ref, be2_ref,
               dlo_ref, dhi_ref, slo_ref, shi_ref, out_ref):
        x = x_ref[...]                                           # (NR, LIN)

        # ---- conv1 (+ fused 1x1 shortcut): one Toeplitz matmul ----
        win1 = _conv_window(x, K, pad, H)                        # (NR, K*LIN)
        yf = jnp.dot(win1, t1_ref[...],
                     preferred_element_type=jnp.float32) + b1_ref[...]
        yf = _batchnorm(yf, f1_ref, f1t_ref, g1_ref, be1_ref, count1)
        if use_proj:
            a1 = _lrelu(yf[:, :L1])                              # (NR, L1)
            identity = yf[:, L1:]                                # (NR, Ws*Cout)
        else:
            a1 = _lrelu(yf)
            identity = x[:, :L2]

        # ---- conv2 -> bn2 ----
        win2 = _conv_window(a1, K, pad, Hc1)                     # (NR, K*L1)
        y2 = jnp.dot(win2, t2_ref[...],
                     preferred_element_type=jnp.float32) + b2_ref[...]
        y2 = _batchnorm(y2, f2_ref, f2t_ref, g2_ref, be2_ref, count2)

        # ---- residual add + leaky relu ----
        z = _lrelu(y2 + identity)                                # (NR, L2)

        # ---- maxpool 3x3 / s2 / p1: rolls + masks, then constant matmuls ----
        neg = jnp.float32(-jnp.inf)
        lane = jax.lax.broadcasted_iota(jnp.int32, z.shape, 1)
        row = _local_row(z.shape, Hc2)
        wl = jnp.where(lane >= Cout, pltpu.roll(z, Cout, axis=1), neg)
        wr = jnp.where(lane < (Wc2 - 1) * Cout,
                       pltpu.roll(z, (L2 - Cout) % L2, axis=1), neg)
        wm = jnp.maximum(jnp.maximum(z, wl), wr)                 # W-direction 3-max
        hu = jnp.where(row >= 1, pltpu.roll(wm, 1, axis=0), neg)
        hd = jnp.where(row <= Hc2 - 2, pltpu.roll(wm, NR - 1, axis=0), neg)
        m3 = jnp.maximum(jnp.maximum(wm, hu), hd)                # full 3x3 max

        # stride-2 subsample + pack two pooled rows per 128-lane output row:
        # row selection (left matmul) and even-column deinterleave (right
        # matmul) with constant 0/1 matrices on the otherwise idle MXU.
        plo = jnp.dot(slo_ref[...], m3, preferred_element_type=jnp.float32)
        phi = jnp.dot(shi_ref[...], m3, preferred_element_type=jnp.float32)
        out = (jnp.dot(plo, dlo_ref[...], preferred_element_type=jnp.float32)
               + jnp.dot(phi, dhi_ref[...], preferred_element_type=jnp.float32))
        out_ref[...] = out.astype(out_ref.dtype)

    args = [xf,
            t1f, b1f, jnp.asarray(F1), jnp.asarray(F1.T), g1f, be1f,
            t2, b2t, jnp.asarray(F2), jnp.asarray(F2.T),
            params["g2"].reshape(1, Cout).astype(f32),
            params["be2"].reshape(1, Cout).astype(f32),
            jnp.asarray(dlo), jnp.asarray(dhi),
            jnp.asarray(slo), jnp.asarray(shi)]

    vmem = pl.BlockSpec(memory_space=pltpu.MemorySpace.VMEM)
    out = pl.pallas_call(
        kernel,
        out_shape=jax.ShapeDtypeStruct((N * (Hpo // 2), 2 * Wpo * Cout), f32),
        in_specs=[vmem] * len(args),
        out_specs=vmem,
    )(*args)

    # packed (N*Hpo/2, 2*Wpo*Cout) -> NCHW (pure layout plumbing)
    out = out.reshape(N, Hpo // 2, 2, Wpo, Cout).reshape(N, Hpo, Wpo, Cout)
    return jnp.transpose(out, (0, 3, 1, 2))


# ---------------------------------------------------------------------------
# Pure-JAX reference (verification only)
# ---------------------------------------------------------------------------

def resblock_reference(x_nchw, params, *, kernel_size, padding, stride):
    x = jnp.transpose(x_nchw, (0, 2, 3, 1)).astype(jnp.float32)

    def conv(y, w, b, s, p):
        out = jax.lax.conv_general_dilated(
            y, w, window_strides=(s, s), padding=[(p, p), (p, p)],
            dimension_numbers=("NHWC", "HWIO", "NHWC"),
            precision=jax.lax.Precision.HIGHEST)
        return out + b.reshape(1, 1, 1, -1)

    def bn(y, g, b):
        mean = jnp.mean(y, axis=(0, 1, 2), keepdims=True)
        var = jnp.mean(jnp.square(y - mean), axis=(0, 1, 2), keepdims=True)
        return (y - mean) * jax.lax.rsqrt(var + 1e-5) * g.reshape(1, 1, 1, -1) \
            + b.reshape(1, 1, 1, -1)

    lrelu = lambda v: jnp.where(v >= 0, v, 0.01 * v)

    out = lrelu(bn(conv(x, params["w1"], params["b1"], stride, padding),
                   params["g1"], params["be1"]))
    out = bn(conv(out, params["w2"], params["b2"], 1, padding),
             params["g2"], params["be2"])
    Cin, Cout = params["w1"].shape[2], params["w1"].shape[3]
    if stride != 1 or Cin != Cout:
        ident = bn(conv(x, params["ws"], params["bs"], stride, 0),
                   params["gs"], params["bes"])
    else:
        ident = x
    z = lrelu(out + ident)
    z = jax.lax.reduce_window(
        z, -jnp.inf, jax.lax.max,
        window_dimensions=(1, 3, 3, 1), window_strides=(1, 2, 2, 1),
        padding=((0, 0), (1, 1), (1, 1), (0, 0)))
    return jnp.transpose(z, (0, 3, 1, 2))


if __name__ == "__main__":
    N, Cin, Cout, H, W = 2, 4, 8, 16, 16
    K, PAD, STRIDE = 3, 1, 1

    key = jax.random.PRNGKey(0)
    ks = jax.random.split(key, 14)
    params = {
        "w1": 0.1 * jax.random.normal(ks[0], (K, K, Cin, Cout), jnp.float32),
        "b1": 0.1 * jax.random.normal(ks[1], (1, Cout), jnp.float32),
        "g1": 1.0 + 0.1 * jax.random.normal(ks[2], (1, Cout), jnp.float32),
        "be1": 0.1 * jax.random.normal(ks[3], (1, Cout), jnp.float32),
        "w2": 0.1 * jax.random.normal(ks[4], (K, K, Cout, Cout), jnp.float32),
        "b2": 0.1 * jax.random.normal(ks[5], (1, Cout), jnp.float32),
        "g2": 1.0 + 0.1 * jax.random.normal(ks[6], (1, Cout), jnp.float32),
        "be2": 0.1 * jax.random.normal(ks[7], (1, Cout), jnp.float32),
        "ws": 0.1 * jax.random.normal(ks[8], (1, 1, Cin, Cout), jnp.float32),
        "bs": 0.1 * jax.random.normal(ks[9], (1, Cout), jnp.float32),
        "gs": 1.0 + 0.1 * jax.random.normal(ks[10], (1, Cout), jnp.float32),
        "bes": 0.1 * jax.random.normal(ks[11], (1, Cout), jnp.float32),
    }
    x = jax.random.normal(ks[12], (N, Cin, H, W), jnp.float32)

    out = resblock_forward(x, params, kernel_size=K, padding=PAD, stride=STRIDE)
    out = jax.block_until_ready(out)

    ref = resblock_reference(x, params, kernel_size=K, padding=PAD, stride=STRIDE)
    assert out.shape == (N, Cout, H // 2, W // 2), out.shape
    assert bool(jnp.allclose(out, ref, atol=2e-3, rtol=2e-3)), \
        float(jnp.max(jnp.abs(out - ref)))
    print("KERNEL_OK")
</pallas_src>

<mosaic_0001>
module attributes {stable_mosaic.version = 11 : i64} {
  func.func @kernel(%arg0: memref<32x128xf32, #tpu.memory_space<vmem>>, %arg1: memref<384x256xf32, #tpu.memory_space<vmem>>, %arg2: memref<1x256xf32, #tpu.memory_space<vmem>>, %arg3: memref<256x16xf32, #tpu.memory_space<vmem>>, %arg4: memref<16x256xf32, #tpu.memory_space<vmem>>, %arg5: memref<1x16xf32, #tpu.memory_space<vmem>>, %arg6: memref<1x16xf32, #tpu.memory_space<vmem>>, %arg7: memref<384x128xf32, #tpu.memory_space<vmem>>, %arg8: memref<1x128xf32, #tpu.memory_space<vmem>>, %arg9: memref<128x8xf32, #tpu.memory_space<vmem>>, %arg10: memref<8x128xf32, #tpu.memory_space<vmem>>, %arg11: memref<1x8xf32, #tpu.memory_space<vmem>>, %arg12: memref<1x8xf32, #tpu.memory_space<vmem>>, %arg13: memref<128x128xf32, #tpu.memory_space<vmem>>, %arg14: memref<128x128xf32, #tpu.memory_space<vmem>>, %arg15: memref<8x32xf32, #tpu.memory_space<vmem>>, %arg16: memref<8x32xf32, #tpu.memory_space<vmem>>, %arg17: memref<8x128xf32, #tpu.memory_space<vmem>>) attributes {dimension_semantics = [], scalar_prefetch = 0 : i64, scratch_operands = 0 : i64, tpu.core_type = #tpu.core_type<tc>} {
    %c0 = arith.constant 0 : index
    %c0_0 = arith.constant 0 : index
    %0 = vector.load %arg0[%c0, %c0_0] : memref<32x128xf32, #tpu.memory_space<vmem>>, vector<32x128xf32>
    %1 = tpu.iota {dimensions = array<i32: 0>} : vector<32x128xi32>
    %c15_i32 = arith.constant 15 : i32
    %2 = vector.broadcast %c15_i32 : i32 to vector<32x128xi32>
    %3 = arith.andi %1, %2 : vector<32x128xi32>
    %c1_i32 = arith.constant 1 : i32
    %4 = tpu.dynamic_rotate %0 by %c1_i32 dim 0 : vector<32x128xf32>, i32 -> vector<32x128xf32>
    %c1_i32_1 = arith.constant 1 : i32
    %5 = vector.broadcast %c1_i32_1 : i32 to vector<32x128xi32>
    %6 = arith.subi %3, %5 : vector<32x128xi32>
    %c0_i32 = arith.constant 0 : i32
    %7 = vector.broadcast %c0_i32 : i32 to vector<32x128xi32>
    %8 = arith.cmpi sge, %6, %7 : vector<32x128xi32>
    %c16_i32 = arith.constant 16 : i32
    %9 = vector.broadcast %c16_i32 : i32 to vector<32x128xi32>
    %10 = arith.cmpi slt, %6, %9 : vector<32x128xi32>
    %11 = arith.andi %8, %10 : vector<32x128xi1>
    %cst = arith.constant 0.000000e+00 : f32
    %12 = vector.broadcast %cst : f32 to vector<32x128xf32>
    %13 = arith.select %11, %4, %12 : vector<32x128xi1>, vector<32x128xf32>
    %c31_i32 = arith.constant 31 : i32
    %14 = tpu.dynamic_rotate %0 by %c31_i32 dim 0 : vector<32x128xf32>, i32 -> vector<32x128xf32>
    %c-1_i32 = arith.constant -1 : i32
    %15 = vector.broadcast %c-1_i32 : i32 to vector<32x128xi32>
    %16 = arith.subi %3, %15 : vector<32x128xi32>
    %c0_i32_2 = arith.constant 0 : i32
    %17 = vector.broadcast %c0_i32_2 : i32 to vector<32x128xi32>
    %18 = arith.cmpi sge, %16, %17 : vector<32x128xi32>
    %c16_i32_3 = arith.constant 16 : i32
    %19 = vector.broadcast %c16_i32_3 : i32 to vector<32x128xi32>
    %20 = arith.cmpi slt, %16, %19 : vector<32x128xi32>
    %21 = arith.andi %18, %20 : vector<32x128xi1>
    %cst_4 = arith.constant 0.000000e+00 : f32
    %22 = vector.broadcast %cst_4 : f32 to vector<32x128xf32>
    %23 = arith.select %21, %14, %22 : vector<32x128xi1>, vector<32x128xf32>
    %24 = tpu.concatenate %13, %0, %23 in 1 : vector<32x128xf32>, vector<32x128xf32>, vector<32x128xf32> -> vector<32x384xf32>
    %c0_5 = arith.constant 0 : index
    %c0_6 = arith.constant 0 : index
    %25 = vector.load %arg1[%c0_5, %c0_6] : memref<384x256xf32, #tpu.memory_space<vmem>>, vector<384x256xf32>
    %cst_7 = arith.constant dense<0.000000e+00> : vector<32x256xf32>
    %26 = tpu.matmul %24, %25, %cst_7 {dimension_numbers = #tpu.dot_dimension_numbers<[1], [0], [0], [1], [0, 0, 1, 1], [], []>} : vector<32x384xf32>, vector<384x256xf32>, vector<32x256xf32> -> vector<32x256xf32>
    %c0_8 = arith.constant 0 : index
    %c0_9 = arith.constant 0 : index
    %27 = vector.load %arg2[%c0_8, %c0_9] : memref<1x256xf32, #tpu.memory_space<vmem>>, vector<1x256xf32>
    %28 = vector.broadcast %27 : vector<1x256xf32> to vector<32x256xf32>
    %29 = arith.addf %26, %28 : vector<32x256xf32>
    %c0_10 = arith.constant 0 : index
    %c0_11 = arith.constant 0 : index
    %30 = vector.load %arg3[%c0_10, %c0_11] : memref<256x16xf32, #tpu.memory_space<vmem>>, vector<256x16xf32>
    %cst_12 = arith.constant dense<0.000000e+00> : vector<32x16xf32>
    %31 = tpu.matmul %29, %30, %cst_12 {dimension_numbers = #tpu.dot_dimension_numbers<[1], [0], [0], [1], [0, 0, 1, 1], [], []>} : vector<32x256xf32>, vector<256x16xf32>, vector<32x16xf32> -> vector<32x16xf32>
    %cst_13 = arith.constant dense<0.000000e+00> : vector<16xf32>
    %32 = vector.multi_reduction <add>, %31, %cst_13 [0] : vector<32x16xf32> to vector<16xf32>
    %33 = vector.shape_cast %32 : vector<16xf32> to vector<1x16xf32>
    %34 = arith.mulf %29, %29 : vector<32x256xf32>
    %c0_14 = arith.constant 0 : index
    %c0_15 = arith.constant 0 : index
    %35 = vector.load %arg3[%c0_14, %c0_15] : memref<256x16xf32, #tpu.memory_space<vmem>>, vector<256x16xf32>
    %cst_16 = arith.constant dense<0.000000e+00> : vector<32x16xf32>
    %36 = tpu.matmul %34, %35, %cst_16 {dimension_numbers = #tpu.dot_dimension_numbers<[1], [0], [0], [1], [0, 0, 1, 1], [], []>} : vector<32x256xf32>, vector<256x16xf32>, vector<32x16xf32> -> vector<32x16xf32>
    %cst_17 = arith.constant dense<0.000000e+00> : vector<16xf32>
    %37 = vector.multi_reduction <add>, %36, %cst_17 [0] : vector<32x16xf32> to vector<16xf32>
    %38 = vector.shape_cast %37 : vector<16xf32> to vector<1x16xf32>
    %cst_18 = arith.constant 0.001953125 : f32
    %39 = vector.broadcast %cst_18 : f32 to vector<1x16xf32>
    %40 = arith.mulf %33, %39 : vector<1x16xf32>
    %cst_19 = arith.constant 0.001953125 : f32
    %41 = vector.broadcast %cst_19 : f32 to vector<1x16xf32>
    %42 = arith.mulf %38, %41 : vector<1x16xf32>
    %43 = arith.mulf %40, %40 : vector<1x16xf32>
    %44 = arith.subf %42, %43 : vector<1x16xf32>
    %cst_20 = arith.constant 0.000000e+00 : f32
    %45 = vector.broadcast %cst_20 : f32 to vector<1x16xf32>
    %46 = arith.maximumf %44, %45 : vector<1x16xf32>
    %c0_21 = arith.constant 0 : index
    %c0_22 = arith.constant 0 : index
    %47 = vector.load %arg5[%c0_21, %c0_22] : memref<1x16xf32, #tpu.memory_space<vmem>>, vector<1x16xf32>
    %cst_23 = arith.constant 9.99999974E-6 : f32
    %48 = vector.broadcast %cst_23 : f32 to vector<1x16xf32>
    %49 = arith.addf %46, %48 : vector<1x16xf32>
    %50 = math.rsqrt %49 : vector<1x16xf32>
    %51 = arith.mulf %47, %50 : vector<1x16xf32>
    %c0_24 = arith.constant 0 : index
    %c0_25 = arith.constant 0 : index
    %52 = vector.load %arg6[%c0_24, %c0_25] : memref<1x16xf32, #tpu.memory_space<vmem>>, vector<1x16xf32>
    %53 = arith.mulf %40, %51 : vector<1x16xf32>
    %54 = arith.subf %52, %53 : vector<1x16xf32>
    %c0_26 = arith.constant 0 : index
    %c0_27 = arith.constant 0 : index
    %55 = vector.load %arg4[%c0_26, %c0_27] : memref<16x256xf32, #tpu.memory_space<vmem>>, vector<16x256xf32>
    %cst_28 = arith.constant dense<0.000000e+00> : vector<1x256xf32>
    %56 = tpu.matmul %51, %55, %cst_28 {dimension_numbers = #tpu.dot_dimension_numbers<[1], [0], [0], [1], [0, 0, 1, 1], [], []>} : vector<1x16xf32>, vector<16x256xf32>, vector<1x256xf32> -> vector<1x256xf32>
    %c0_29 = arith.constant 0 : index
    %c0_30 = arith.constant 0 : index
    %57 = vector.load %arg4[%c0_29, %c0_30] : memref<16x256xf32, #tpu.memory_space<vmem>>, vector<16x256xf32>
    %cst_31 = arith.constant dense<0.000000e+00> : vector<1x256xf32>
    %58 = tpu.matmul %54, %57, %cst_31 {dimension_numbers = #tpu.dot_dimension_numbers<[1], [0], [0], [1], [0, 0, 1, 1], [], []>} : vector<1x16xf32>, vector<16x256xf32>, vector<1x256xf32> -> vector<1x256xf32>
    %59 = vector.broadcast %56 : vector<1x256xf32> to vector<32x256xf32>
    %60 = arith.mulf %29, %59 : vector<32x256xf32>
    %61 = vector.broadcast %58 : vector<1x256xf32> to vector<32x256xf32>
    %62 = arith.addf %60, %61 : vector<32x256xf32>
    %63 = vector.extract_strided_slice %62 {offsets = [0, 0], sizes = [32, 128], strides = [1, 1]} : vector<32x256xf32> to vector<32x128xf32>
    %cst_32 = arith.constant 0.000000e+00 : f32
    %64 = vector.broadcast %cst_32 : f32 to vector<32x128xf32>
    %65 = arith.cmpf oge, %63, %64 : vector<32x128xf32>
    %cst_33 = arith.constant 0.00999999977 : f32
    %66 = vector.broadcast %cst_33 : f32 to vector<32x128xf32>
    %67 = arith.mulf %66, %63 : vector<32x128xf32>
    %68 = arith.select %65, %63, %67 : vector<32x128xi1>, vector<32x128xf32>
    %69 = vector.extract_strided_slice %62 {offsets = [0, 128], sizes = [32, 128], strides = [1, 1]} : vector<32x256xf32> to vector<32x128xf32>
    %70 = tpu.iota {dimensions = array<i32: 0>} : vector<32x128xi32>
    %c15_i32_34 = arith.constant 15 : i32
    %71 = vector.broadcast %c15_i32_34 : i32 to vector<32x128xi32>
    %72 = arith.andi %70, %71 : vector<32x128xi32>
    %c1_i32_35 = arith.constant 1 : i32
    %73 = tpu.dynamic_rotate %68 by %c1_i32_35 dim 0 : vector<32x128xf32>, i32 -> vector<32x128xf32>
    %c1_i32_36 = arith.constant 1 : i32
    %74 = vector.broadcast %c1_i32_36 : i32 to vector<32x128xi32>
    %75 = arith.subi %72, %74 : vector<32x128xi32>
    %c0_i32_37 = arith.constant 0 : i32
    %76 = vector.broadcast %c0_i32_37 : i32 to vector<32x128xi32>
    %77 = arith.cmpi sge, %75, %76 : vector<32x128xi32>
    %c16_i32_38 = arith.constant 16 : i32
    %78 = vector.broadcast %c16_i32_38 : i32 to vector<32x128xi32>
    %79 = arith.cmpi slt, %75, %78 : vector<32x128xi32>
    %80 = arith.andi %77, %79 : vector<32x128xi1>
    %cst_39 = arith.constant 0.000000e+00 : f32
    %81 = vector.broadcast %cst_39 : f32 to vector<32x128xf32>
    %82 = arith.select %80, %73, %81 : vector<32x128xi1>, vector<32x128xf32>
    %c31_i32_40 = arith.constant 31 : i32
    %83 = tpu.dynamic_rotate %68 by %c31_i32_40 dim 0 : vector<32x128xf32>, i32 -> vector<32x128xf32>
    %c-1_i32_41 = arith.constant -1 : i32
    %84 = vector.broadcast %c-1_i32_41 : i32 to vector<32x128xi32>
    %85 = arith.subi %72, %84 : vector<32x128xi32>
    %c0_i32_42 = arith.constant 0 : i32
    %86 = vector.broadcast %c0_i32_42 : i32 to vector<32x128xi32>
    %87 = arith.cmpi sge, %85, %86 : vector<32x128xi32>
    %c16_i32_43 = arith.constant 16 : i32
    %88 = vector.broadcast %c16_i32_43 : i32 to vector<32x128xi32>
    %89 = arith.cmpi slt, %85, %88 : vector<32x128xi32>
    %90 = arith.andi %87, %89 : vector<32x128xi1>
    %cst_44 = arith.constant 0.000000e+00 : f32
    %91 = vector.broadcast %cst_44 : f32 to vector<32x128xf32>
    %92 = arith.select %90, %83, %91 : vector<32x128xi1>, vector<32x128xf32>
    %93 = tpu.concatenate %82, %68, %92 in 1 : vector<32x128xf32>, vector<32x128xf32>, vector<32x128xf32> -> vector<32x384xf32>
    %c0_45 = arith.constant 0 : index
    %c0_46 = arith.constant 0 : index
    %94 = vector.load %arg7[%c0_45, %c0_46] : memref<384x128xf32, #tpu.memory_space<vmem>>, vector<384x128xf32>
    %cst_47 = arith.constant dense<0.000000e+00> : vector<32x128xf32>
    %95 = tpu.matmul %93, %94, %cst_47 {dimension_numbers = #tpu.dot_dimension_numbers<[1], [0], [0], [1], [0, 0, 1, 1], [], []>} : vector<32x384xf32>, vector<384x128xf32>, vector<32x128xf32> -> vector<32x128xf32>
    %c0_48 = arith.constant 0 : index
    %c0_49 = arith.constant 0 : index
    %96 = vector.load %arg8[%c0_48, %c0_49] : memref<1x128xf32, #tpu.memory_space<vmem>>, vector<1x128xf32>
    %97 = vector.broadcast %96 : vector<1x128xf32> to vector<32x128xf32>
    %98 = arith.addf %95, %97 : vector<32x128xf32>
    %c0_50 = arith.constant 0 : index
    %c0_51 = arith.constant 0 : index
    %99 = vector.load %arg9[%c0_50, %c0_51] : memref<128x8xf32, #tpu.memory_space<vmem>>, vector<128x8xf32>
    %cst_52 = arith.constant dense<0.000000e+00> : vector<32x8xf32>
    %100 = tpu.matmul %98, %99, %cst_52 {dimension_numbers = #tpu.dot_dimension_numbers<[1], [0], [0], [1], [0, 0, 1, 1], [], []>} : vector<32x128xf32>, vector<128x8xf32>, vector<32x8xf32> -> vector<32x8xf32>
    %cst_53 = arith.constant dense<0.000000e+00> : vector<8xf32>
    %101 = vector.multi_reduction <add>, %100, %cst_53 [0] : vector<32x8xf32> to vector<8xf32>
    %102 = vector.shape_cast %101 : vector<8xf32> to vector<1x8xf32>
    %103 = arith.mulf %98, %98 : vector<32x128xf32>
    %c0_54 = arith.constant 0 : index
    %c0_55 = arith.constant 0 : index
    %104 = vector.load %arg9[%c0_54, %c0_55] : memref<128x8xf32, #tpu.memory_space<vmem>>, vector<128x8xf32>
    %cst_56 = arith.constant dense<0.000000e+00> : vector<32x8xf32>
    %105 = tpu.matmul %103, %104, %cst_56 {dimension_numbers = #tpu.dot_dimension_numbers<[1], [0], [0], [1], [0, 0, 1, 1], [], []>} : vector<32x128xf32>, vector<128x8xf32>, vector<32x8xf32> -> vector<32x8xf32>
    %cst_57 = arith.constant dense<0.000000e+00> : vector<8xf32>
    %106 = vector.multi_reduction <add>, %105, %cst_57 [0] : vector<32x8xf32> to vector<8xf32>
    %107 = vector.shape_cast %106 : vector<8xf32> to vector<1x8xf32>
    %cst_58 = arith.constant 0.001953125 : f32
    %108 = vector.broadcast %cst_58 : f32 to vector<1x8xf32>
    %109 = arith.mulf %102, %108 : vector<1x8xf32>
    %cst_59 = arith.constant 0.001953125 : f32
    %110 = vector.broadcast %cst_59 : f32 to vector<1x8xf32>
    %111 = arith.mulf %107, %110 : vector<1x8xf32>
    %112 = arith.mulf %109, %109 : vector<1x8xf32>
    %113 = arith.subf %111, %112 : vector<1x8xf32>
    %cst_60 = arith.constant 0.000000e+00 : f32
    %114 = vector.broadcast %cst_60 : f32 to vector<1x8xf32>
    %115 = arith.maximumf %113, %114 : vector<1x8xf32>
    %c0_61 = arith.constant 0 : index
    %c0_62 = arith.constant 0 : index
    %116 = vector.load %arg11[%c0_61, %c0_62] : memref<1x8xf32, #tpu.memory_space<vmem>>, vector<1x8xf32>
    %cst_63 = arith.constant 9.99999974E-6 : f32
    %117 = vector.broadcast %cst_63 : f32 to vector<1x8xf32>
    %118 = arith.addf %115, %117 : vector<1x8xf32>
    %119 = math.rsqrt %118 : vector<1x8xf32>
    %120 = arith.mulf %116, %119 : vector<1x8xf32>
    %c0_64 = arith.constant 0 : index
    %c0_65 = arith.constant 0 : index
    %121 = vector.load %arg12[%c0_64, %c0_65] : memref<1x8xf32, #tpu.memory_space<vmem>>, vector<1x8xf32>
    %122 = arith.mulf %109, %120 : vector<1x8xf32>
    %123 = arith.subf %121, %122 : vector<1x8xf32>
    %c0_66 = arith.constant 0 : index
    %c0_67 = arith.constant 0 : index
    %124 = vector.load %arg10[%c0_66, %c0_67] : memref<8x128xf32, #tpu.memory_space<vmem>>, vector<8x128xf32>
    %cst_68 = arith.constant dense<0.000000e+00> : vector<1x128xf32>
    %125 = tpu.matmul %120, %124, %cst_68 {dimension_numbers = #tpu.dot_dimension_numbers<[1], [0], [0], [1], [0, 0, 1, 1], [], []>} : vector<1x8xf32>, vector<8x128xf32>, vector<1x128xf32> -> vector<1x128xf32>
    %c0_69 = arith.constant 0 : index
    %c0_70 = arith.constant 0 : index
    %126 = vector.load %arg10[%c0_69, %c0_70] : memref<8x128xf32, #tpu.memory_space<vmem>>, vector<8x128xf32>
    %cst_71 = arith.constant dense<0.000000e+00> : vector<1x128xf32>
    %127 = tpu.matmul %123, %126, %cst_71 {dimension_numbers = #tpu.dot_dimension_numbers<[1], [0], [0], [1], [0, 0, 1, 1], [], []>} : vector<1x8xf32>, vector<8x128xf32>, vector<1x128xf32> -> vector<1x128xf32>
    %128 = vector.broadcast %125 : vector<1x128xf32> to vector<32x128xf32>
    %129 = arith.mulf %98, %128 : vector<32x128xf32>
    %130 = vector.broadcast %127 : vector<1x128xf32> to vector<32x128xf32>
    %131 = arith.addf %129, %130 : vector<32x128xf32>
    %132 = arith.addf %131, %69 : vector<32x128xf32>
    %cst_72 = arith.constant 0.000000e+00 : f32
    %133 = vector.broadcast %cst_72 : f32 to vector<32x128xf32>
    %134 = arith.cmpf oge, %132, %133 : vector<32x128xf32>
    %cst_73 = arith.constant 0.00999999977 : f32
    %135 = vector.broadcast %cst_73 : f32 to vector<32x128xf32>
    %136 = arith.mulf %135, %132 : vector<32x128xf32>
    %137 = arith.select %134, %132, %136 : vector<32x128xi1>, vector<32x128xf32>
    %138 = tpu.iota {dimensions = array<i32: 1>} : vector<32x128xi32>
    %139 = tpu.iota {dimensions = array<i32: 0>} : vector<32x128xi32>
    %c15_i32_74 = arith.constant 15 : i32
    %140 = vector.broadcast %c15_i32_74 : i32 to vector<32x128xi32>
    %141 = arith.andi %139, %140 : vector<32x128xi32>
    %c8_i32 = arith.constant 8 : i32
    %142 = vector.broadcast %c8_i32 : i32 to vector<32x128xi32>
    %143 = arith.cmpi sge, %138, %142 : vector<32x128xi32>
    %c8_i32_75 = arith.constant 8 : i32
    %144 = tpu.dynamic_rotate %137 by %c8_i32_75 dim 1 : vector<32x128xf32>, i32 -> vector<32x128xf32>
    %cst_76 = arith.constant 0xFF800000 : f32
    %145 = vector.broadcast %cst_76 : f32 to vector<32x128xf32>
    %146 = arith.select %143, %144, %145 : vector<32x128xi1>, vector<32x128xf32>
    %c120_i32 = arith.constant 120 : i32
    %147 = vector.broadcast %c120_i32 : i32 to vector<32x128xi32>
    %148 = arith.cmpi slt, %138, %147 : vector<32x128xi32>
    %c120_i32_77 = arith.constant 120 : i32
    %149 = tpu.dynamic_rotate %137 by %c120_i32_77 dim 1 : vector<32x128xf32>, i32 -> vector<32x128xf32>
    %cst_78 = arith.constant 0xFF800000 : f32
    %150 = vector.broadcast %cst_78 : f32 to vector<32x128xf32>
    %151 = arith.select %148, %149, %150 : vector<32x128xi1>, vector<32x128xf32>
    %152 = arith.maximumf %137, %146 : vector<32x128xf32>
    %153 = arith.maximumf %152, %151 : vector<32x128xf32>
    %c1_i32_79 = arith.constant 1 : i32
    %154 = vector.broadcast %c1_i32_79 : i32 to vector<32x128xi32>
    %155 = arith.cmpi sge, %141, %154 : vector<32x128xi32>
    %c1_i32_80 = arith.constant 1 : i32
    %156 = tpu.dynamic_rotate %153 by %c1_i32_80 dim 0 : vector<32x128xf32>, i32 -> vector<32x128xf32>
    %cst_81 = arith.constant 0xFF800000 : f32
    %157 = vector.broadcast %cst_81 : f32 to vector<32x128xf32>
    %158 = arith.select %155, %156, %157 : vector<32x128xi1>, vector<32x128xf32>
    %c14_i32 = arith.constant 14 : i32
    %159 = vector.broadcast %c14_i32 : i32 to vector<32x128xi32>
    %160 = arith.cmpi sle, %141, %159 : vector<32x128xi32>
    %c31_i32_82 = arith.constant 31 : i32
    %161 = tpu.dynamic_rotate %153 by %c31_i32_82 dim 0 : vector<32x128xf32>, i32 -> vector<32x128xf32>
    %cst_83 = arith.constant 0xFF800000 : f32
    %162 = vector.broadcast %cst_83 : f32 to vector<32x128xf32>
    %163 = arith.select %160, %161, %162 : vector<32x128xi1>, vector<32x128xf32>
    %164 = arith.maximumf %153, %158 : vector<32x128xf32>
    %165 = arith.maximumf %164, %163 : vector<32x128xf32>
    %c0_84 = arith.constant 0 : index
    %c0_85 = arith.constant 0 : index
    %166 = vector.load %arg15[%c0_84, %c0_85] : memref<8x32xf32, #tpu.memory_space<vmem>>, vector<8x32xf32>
    %cst_86 = arith.constant dense<0.000000e+00> : vector<8x128xf32>
    %167 = tpu.matmul %166, %165, %cst_86 {dimension_numbers = #tpu.dot_dimension_numbers<[1], [0], [0], [1], [0, 0, 1, 1], [], []>} : vector<8x32xf32>, vector<32x128xf32>, vector<8x128xf32> -> vector<8x128xf32>
    %c0_87 = arith.constant 0 : index
    %c0_88 = arith.constant 0 : index
    %168 = vector.load %arg16[%c0_87, %c0_88] : memref<8x32xf32, #tpu.memory_space<vmem>>, vector<8x32xf32>
    %cst_89 = arith.constant dense<0.000000e+00> : vector<8x128xf32>
    %169 = tpu.matmul %168, %165, %cst_89 {dimension_numbers = #tpu.dot_dimension_numbers<[1], [0], [0], [1], [0, 0, 1, 1], [], []>} : vector<8x32xf32>, vector<32x128xf32>, vector<8x128xf32> -> vector<8x128xf32>
    %c0_90 = arith.constant 0 : index
    %c0_91 = arith.constant 0 : index
    %170 = vector.load %arg13[%c0_90, %c0_91] : memref<128x128xf32, #tpu.memory_space<vmem>>, vector<128x128xf32>
    %cst_92 = arith.constant dense<0.000000e+00> : vector<8x128xf32>
    %171 = tpu.matmul %167, %170, %cst_92 {dimension_numbers = #tpu.dot_dimension_numbers<[1], [0], [0], [1], [0, 0, 1, 1], [], []>} : vector<8x128xf32>, vector<128x128xf32>, vector<8x128xf32> -> vector<8x128xf32>
    %c0_93 = arith.constant 0 : index
    %c0_94 = arith.constant 0 : index
    %172 = vector.load %arg14[%c0_93, %c0_94] : memref<128x128xf32, #tpu.memory_space<vmem>>, vector<128x128xf32>
    %cst_95 = arith.constant dense<0.000000e+00> : vector<8x128xf32>
    %173 = tpu.matmul %169, %172, %cst_95 {dimension_numbers = #tpu.dot_dimension_numbers<[1], [0], [0], [1], [0, 0, 1, 1], [], []>} : vector<8x128xf32>, vector<128x128xf32>, vector<8x128xf32> -> vector<8x128xf32>
    %174 = arith.addf %171, %173 : vector<8x128xf32>
    %c0_96 = arith.constant 0 : index
    %c0_97 = arith.constant 0 : index
    %175 = vector.load %arg17[%c0_96, %c0_97] : memref<8x128xf32, #tpu.memory_space<vmem>>, vector<8x128xf32>
    tpu.vector_store %arg17[%c0_96, %c0_97], %174 {strides = array<i32>} : memref<8x128xf32, #tpu.memory_space<vmem>>, vector<8x128xf32>,
    return
  }
}

</mosaic_0001>

<llo_original>
// kernel: tpu_custom_call.1
$region0: #{tpu_custom_call.1}
  #allocation0 [shape = 'u32[]', space=smem, size = 0x4, offset = 0x4, fixed_abs, tag = 'smem constant byte address 0x4 - core index']
  #allocation1 [shape = 'u32[144,128]{1,0:T(1,128)}', space=vmem, size = 0x12000, scoped, tag = 'internal scratch']
  %s0 = inlined_call_operand.vmem [shape: f32[32,128], index: 0, kind: input, shape index: {}]
  %s1 = inlined_call_operand.hbm [shape: f32[384,256], index: 1, kind: input, shape index: {}]
  %s2 = inlined_call_operand.vmem [shape: f32[1,256], index: 2, kind: input, shape index: {}]
  %s3 = inlined_call_operand.vmem [shape: f32[256,16], index: 3, kind: input, shape index: {}]
  %s4 = inlined_call_operand.vmem [shape: f32[16,256], index: 4, kind: input, shape index: {}]
  %s5 = inlined_call_operand.hbm [shape: f32[1,16], index: 5, kind: input, shape index: {}]
  %s6 = inlined_call_operand.hbm [shape: f32[1,16], index: 6, kind: input, shape index: {}]
  %s7 = inlined_call_operand.vmem [shape: f32[384,128], index: 7, kind: input, shape index: {}]
  %s8 = inlined_call_operand.vmem [shape: f32[1,128], index: 8, kind: input, shape index: {}]
  %s9 = inlined_call_operand.vmem [shape: f32[128,8], index: 9, kind: input, shape index: {}]
  %s10 = inlined_call_operand.vmem [shape: f32[8,128], index: 10, kind: input, shape index: {}]
  %s11 = inlined_call_operand.vmem [shape: f32[1,8], index: 11, kind: input, shape index: {}]
  %s12 = inlined_call_operand.vmem [shape: f32[1,8], index: 12, kind: input, shape index: {}]
  %s13 = inlined_call_operand.hbm [shape: f32[128,128], index: 13, kind: input, shape index: {}]
  %s14 = inlined_call_operand.hbm [shape: f32[128,128], index: 14, kind: input, shape index: {}]
  %s15 = inlined_call_operand.vmem [shape: f32[8,32], index: 15, kind: input, shape index: {}]
  %s16 = inlined_call_operand.vmem [shape: f32[8,32], index: 16, kind: input, shape index: {}]
  %s17 = inlined_call_operand.hbm [shape: f32[8,128], index: 17, kind: output, shape index: {}]
  %s18 = sld [smem:[#allocation0]]
  $region98: #{tpu_custom_call.1} parent=0
    _
  %s20 = ssub.s32 1, %s18
  %s21 = scalar_select 0, %s20, %s18
  $region1: #{tpu_custom_call.1} parent=0
    #allocation2 [shape = 'u8[393216]{0}', space=vmem, size = 0x60000, scoped, tag = 'input window, operand 1, single buffered']
    #allocation3 [shape = 's32[1]{0}', space=sflag, size = 0x4, scoped, tag = 'scoped memory for tpu_custom_call.1']
    #allocation4 [shape = 's32[1]{0}', space=sflag, size = 0x4, scoped, tag = 'scoped memory for tpu_custom_call.1']
    #allocation5 [shape = 'u8[512]{0}', space=vmem, size = 0x400, scoped, tag = 'input window, operand 5, single buffered']
    #allocation6 [shape = 's32[1]{0}', space=sflag, size = 0x4, scoped, tag = 'scoped memory for tpu_custom_call.1']
    #allocation7 [shape = 'u8[512]{0}', space=vmem, size = 0x400, scoped, tag = 'input window, operand 6, single buffered']
    #allocation8 [shape = 'u8[65536]{0}', space=vmem, size = 0x10000, scoped, tag = 'input window, operand 13, single buffered']
    #allocation9 [shape = 's32[1]{0}', space=sflag, size = 0x4, scoped, tag = 'scoped memory for tpu_custom_call.1']
    #allocation10 [shape = 'u8[65536]{0}', space=vmem, size = 0x10000, scoped, tag = 'input window, operand 14, single buffered']
    #allocation11 [shape = 'u8[4096]{0}', space=vmem, size = 0x1000, scoped, tag = 'output window, operand 0, single buffered']
    %22 = vsyncpa [#allocation3], 0
    %23 = vsyncpa [#allocation6], 0
    %24 = vsyncpa [#allocation9], 0
    %25 = vsyncpa [#allocation4], 0
    // Predicated region
    $region2: #{tpu_custom_call.1} parent=1 // pred_check
      _
    $region3: #{tpu_custom_call.1} parent=1 // pred_check_branch
      %27 = sbr.rel (0) target = $region5
    $region4: #{tpu_custom_call.1} parent=1 // pred_region
      _
    $region5: #{tpu_custom_call.1} parent=1 // pred_fallthru
      _
    // Predicated region
    $region6: #{tpu_custom_call.1} parent=1 // pred_check
      _
    $region7: #{tpu_custom_call.1} parent=1 // pred_check_branch
      %29 = sbr.rel (0) target = $region9
    $region8: #{tpu_custom_call.1} parent=1 // pred_region
      %s31 = ssub.s32 12288, 12288
      %32 = vsyncadd [#allocation3], %s31
      %s33 = sshll.u32 [#allocation2], 4
      %s34 = int_to_ptr.vmem [resolvable:$true] %s33
      %39 = dma.hbm_to_vmem [thread:$0]  %s1, 12288, %s34, [#allocation3], 256, 256, 16
    $region9: #{tpu_custom_call.1} parent=1 // pred_fallthru
      _
    // Predicated region
    $region10: #{tpu_custom_call.1} parent=1 // pred_check
      _
    $region11: #{tpu_custom_call.1} parent=1 // pred_check_branch
      %41 = sbr.rel (0) target = $region13
    $region12: #{tpu_custom_call.1} parent=1 // pred_region
      _
    $region13: #{tpu_custom_call.1} parent=1 // pred_fallthru
      _
    // Predicated region
    $region14: #{tpu_custom_call.1} parent=1 // pred_check
      _
    $region15: #{tpu_custom_call.1} parent=1 // pred_check_branch
      %43 = sbr.rel (0) target = $region17
    $region16: #{tpu_custom_call.1} parent=1 // pred_region
      _
    $region17: #{tpu_custom_call.1} parent=1 // pred_fallthru
      _
    // Predicated region
    $region18: #{tpu_custom_call.1} parent=1 // pred_check
      _
    $region19: #{tpu_custom_call.1} parent=1 // pred_check_branch
      %45 = sbr.rel (0) target = $region21
    $region20: #{tpu_custom_call.1} parent=1 // pred_region
      _
    $region21: #{tpu_custom_call.1} parent=1 // pred_fallthru
      _
    // Predicated region
    $region22: #{tpu_custom_call.1} parent=1 // pred_check
      _
    $region23: #{tpu_custom_call.1} parent=1 // pred_check_branch
      %47 = sbr.rel (0) target = $region25
    $region24: #{tpu_custom_call.1} parent=1 // pred_region
      %s49 = ssub.s32 16, 16
      %50 = vsyncadd [#allocation6], %s49
      %s52 = sshll.u32 [#allocation5], 4
      %s53 = int_to_ptr.vmem [resolvable:$true] %s52
      %55 = dma.hbm_to_vmem [thread:$0]  %s5, 16, %s53, [#allocation6]
    $region25: #{tpu_custom_call.1} parent=1 // pred_fallthru
      _
    // Predicated region
    $region26: #{tpu_custom_call.1} parent=1 // pred_check
      _
    $region27: #{tpu_custom_call.1} parent=1 // pred_check_branch
      %57 = sbr.rel (0) target = $region29
    $region28: #{tpu_custom_call.1} parent=1 // pred_region
      %s59 = ssub.s32 16, 16
      %60 = vsyncadd [#allocation6], %s59
      %s62 = sshll.u32 [#allocation7], 4
      %s63 = int_to_ptr.vmem [resolvable:$true] %s62
      %65 = dma.hbm_to_vmem [thread:$0]  %s6, 16, %s63, [#allocation6]
    $region29: #{tpu_custom_call.1} parent=1 // pred_fallthru
      _
    // Predicated region
    $region30: #{tpu_custom_call.1} parent=1 // pred_check
      _
    $region31: #{tpu_custom_call.1} parent=1 // pred_check_branch
      %67 = sbr.rel (0) target = $region33
    $region32: #{tpu_custom_call.1} parent=1 // pred_region
      _
    $region33: #{tpu_custom_call.1} parent=1 // pred_fallthru
      _
    // Predicated region
    $region34: #{tpu_custom_call.1} parent=1 // pred_check
      _
    $region35: #{tpu_custom_call.1} parent=1 // pred_check_branch
      %69 = sbr.rel (0) target = $region37
    $region36: #{tpu_custom_call.1} parent=1 // pred_region
      _
    $region37: #{tpu_custom_call.1} parent=1 // pred_fallthru
      _
    // Predicated region
    $region38: #{tpu_custom_call.1} parent=1 // pred_check
      _
    $region39: #{tpu_custom_call.1} parent=1 // pred_check_branch
      %71 = sbr.rel (0) target = $region41
    $region40: #{tpu_custom_call.1} parent=1 // pred_region
      _
    $region41: #{tpu_custom_call.1} parent=1 // pred_fallthru
      _
    // Predicated region
    $region42: #{tpu_custom_call.1} parent=1 // pred_check
      _
    $region43: #{tpu_custom_call.1} parent=1 // pred_check_branch
      %73 = sbr.rel (0) target = $region45
    $region44: #{tpu_custom_call.1} parent=1 // pred_region
      _
    $region45: #{tpu_custom_call.1} parent=1 // pred_fallthru
      _
    // Predicated region
    $region46: #{tpu_custom_call.1} parent=1 // pred_check
      _
    $region47: #{tpu_custom_call.1} parent=1 // pred_check_branch
      %75 = sbr.rel (0) target = $region49
    $region48: #{tpu_custom_call.1} parent=1 // pred_region
      _
    $region49: #{tpu_custom_call.1} parent=1 // pred_fallthru
      _
    // Predicated region
    $region50: #{tpu_custom_call.1} parent=1 // pred_check
      _
    $region51: #{tpu_custom_call.1} parent=1 // pred_check_branch
      %77 = sbr.rel (0) target = $region53
    $region52: #{tpu_custom_call.1} parent=1 // pred_region
      _
    $region53: #{tpu_custom_call.1} parent=1 // pred_fallthru
      _
    // Predicated region
    $region54: #{tpu_custom_call.1} parent=1 // pred_check
      _
    $region55: #{tpu_custom_call.1} parent=1 // pred_check_branch
      %79 = sbr.rel (0) target = $region57
    $region56: #{tpu_custom_call.1} parent=1 // pred_region
      %s81 = ssub.s32 2048, 2048
      %82 = vsyncadd [#allocation9], %s81
      %s83 = sshll.u32 [#allocation8], 4
      %s84 = int_to_ptr.vmem [resolvable:$true] %s83
      %89 = dma.hbm_to_vmem [thread:$0]  %s13, 2048, %s84, [#allocation9], 128, 128, 8
    $region57: #{tpu_custom_call.1} parent=1 // pred_fallthru
      _
    // Predicated region
    $region58: #{tpu_custom_call.1} parent=1 // pred_check
      _
    $region59: #{tpu_custom_call.1} parent=1 // pred_check_branch
      %91 = sbr.rel (0) target = $region61
    $region60: #{tpu_custom_call.1} parent=1 // pred_region
      %s93 = ssub.s32 2048, 2048
      %94 = vsyncadd [#allocation9], %s93
      %s95 = sshll.u32 [#allocation10], 4
      %s96 = int_to_ptr.vmem [resolvable:$true] %s95
      %101 = dma.hbm_to_vmem [thread:$0]  %s14, 2048, %s96, [#allocation9], 128, 128, 8
    $region61: #{tpu_custom_call.1} parent=1 // pred_fallthru
      _
    // Predicated region
    $region62: #{tpu_custom_call.1} parent=1 // pred_check
      _
    $region63: #{tpu_custom_call.1} parent=1 // pred_check_branch
      %103 = sbr.rel (0) target = $region65
    $region64: #{tpu_custom_call.1} parent=1 // pred_region
      _
    $region65: #{tpu_custom_call.1} parent=1 // pred_fallthru
      _
    // Predicated region
    $region66: #{tpu_custom_call.1} parent=1 // pred_check
      _
    $region67: #{tpu_custom_call.1} parent=1 // pred_check_branch
      %105 = sbr.rel (0) target = $region69
    $region68: #{tpu_custom_call.1} parent=1 // pred_region
      _
    $region69: #{tpu_custom_call.1} parent=1 // pred_fallthru
      _
    // Predicated region
    $region70: #{tpu_custom_call.1} parent=1 // pred_check
      _
    $region71: #{tpu_custom_call.1} parent=1 // pred_check_branch
      %107 = sbr.rel (0) target = $region73
    $region72: #{tpu_custom_call.1} parent=1 // pred_region
      %108 = dma.done [#allocation3], 12288
    $region73: #{tpu_custom_call.1} parent=1 // pred_fallthru
      _
    // Predicated region
    $region74: #{tpu_custom_call.1} parent=1 // pred_check
      _
    $region75: #{tpu_custom_call.1} parent=1 // pred_check_branch
      %110 = sbr.rel (0) target = $region77
    $region76: #{tpu_custom_call.1} parent=1 // pred_region
      %111 = dma.done [#allocation6], 16
    $region77: #{tpu_custom_call.1} parent=1 // pred_fallthru
      _
    // Predicated region
    $region78: #{tpu_custom_call.1} parent=1 // pred_check
      _
    $region79: #{tpu_custom_call.1} parent=1 // pred_check_branch
      %113 = sbr.rel (0) target = $region81
    $region80: #{tpu_custom_call.1} parent=1 // pred_region
      %114 = dma.done [#allocation6], 16
    $region81: #{tpu_custom_call.1} parent=1 // pred_fallthru
      _
    // Predicated region
    $region82: #{tpu_custom_call.1} parent=1 // pred_check
      _
    $region83: #{tpu_custom_call.1} parent=1 // pred_check_branch
      %116 = sbr.rel (0) target = $region85
    $region84: #{tpu_custom_call.1} parent=1 // pred_region
      %117 = dma.done [#allocation9], 2048
    $region85: #{tpu_custom_call.1} parent=1 // pred_fallthru
      _
    // Predicated region
    $region86: #{tpu_custom_call.1} parent=1 // pred_check
      _
    $region87: #{tpu_custom_call.1} parent=1 // pred_check_branch
      %119 = sbr.rel (0) target = $region89
    $region88: #{tpu_custom_call.1} parent=1 // pred_region
      %120 = dma.done [#allocation9], 2048
    $region89: #{tpu_custom_call.1} parent=1 // pred_fallthru
      _
    %v121 = vld [vmem:[%s0] sm:$0xff]
    %v122 = vld [vmem:[%s0 + $0x8] sm:$0xff]
    %v123 = vld [vmem:[%s0 + $0x10] sm:$0xff]
    %v124 = vld [vmem:[%s0 + $0x18] sm:$0xff]
    %v125 = vlaneseq
    %v126 = vshrl.u32 %v125, 7
    %v127 = vadd.s32 %v126, 8
    %v128 = vadd.s32 %v126, 16
    %v129 = vadd.s32 %v126, 24
    %v130 = vand.u32 %v126, 15
    %v131 = vand.u32 %v127, 15
    %v132 = vand.u32 %v128, 15
    %v133 = vand.u32 %v129, 15
    %v134 = vrot.slane %v121, 7
    %v135 = vrot.slane %v122, 7
    %v136 = vrot.slane %v123, 7
    %v137 = vrot.slane %v124, 7
    %vm138 = vcmp.lt.s32.totalorder %v126, 1
    %v139 = vsel %vm138, %v136, %v137
    %v140 = vsel %vm138, %v135, %v136
    %v141 = vsel %vm138, %v134, %v135
    %v142 = vsel %vm138, %v137, %v134
    %v143 = vsub.s32 %v130, 1
    %v144 = vsub.s32 %v131, 1
    %v145 = vsub.s32 %v132, 1
    %v146 = vsub.s32 %v133, 1
    %vm147 = vcmp.ge.s32.totalorder %v143, 0
    %vm148 = vcmp.ge.s32.totalorder %v144, 0
    %vm149 = vcmp.ge.s32.totalorder %v145, 0
    %vm150 = vcmp.ge.s32.totalorder %v146, 0
    %vm151 = vcmp.lt.s32.totalorder %v143, 16
    %vm152 = vcmp.lt.s32.totalorder %v144, 16
    %vm153 = vcmp.lt.s32.totalorder %v145, 16
    %vm154 = vcmp.lt.s32.totalorder %v146, 16
    %vm155 = vmand %vm147, %vm151
    %vm156 = vmand %vm148, %vm152
    %vm157 = vmand %vm149, %vm153
    %vm158 = vmand %vm150, %vm154
    %v159 = vsel %vm155, %v142, 0.0
    %v160 = vsel %vm156, %v141, 0.0
    %v161 = vsel %vm157, %v140, 0.0
    %v162 = vsel %vm158, %v139, 0.0
    %v163 = vrot.slane %v121, 1
    %v164 = vrot.slane %v122, 1
    %v165 = vrot.slane %v123, 1
    %v166 = vrot.slane %v124, 1
    %vm167 = vcmp.lt.s32.totalorder %v126, 7
    %v168 = vsel %vm167, %v165, %v166
    %v169 = vsel %vm167, %v164, %v165
    %v170 = vsel %vm167, %v163, %v164
    %v171 = vsel %vm167, %v166, %v163
    %v172 = vsub.s32 %v130, 4294967295
    %v173 = vsub.s32 %v131, 4294967295
    %v174 = vsub.s32 %v132, 4294967295
    %v175 = vsub.s32 %v133, 4294967295
    %vm176 = vcmp.ge.s32.totalorder %v172, 0
    %vm177 = vcmp.ge.s32.totalorder %v173, 0
    %vm178 = vcmp.ge.s32.totalorder %v174, 0
    %vm179 = vcmp.ge.s32.totalorder %v175, 0
    %vm180 = vcmp.lt.s32.totalorder %v172, 16
    %vm181 = vcmp.lt.s32.totalorder %v173, 16
    %vm182 = vcmp.lt.s32.totalorder %v174, 16
    %vm183 = vcmp.lt.s32.totalorder %v175, 16
    %vm184 = vmand %vm176, %vm180
    %vm185 = vmand %vm177, %vm181
    %vm186 = vmand %vm178, %vm182
    %vm187 = vmand %vm179, %vm183
    %v188 = vsel %vm184, %v170, 0.0
    %v189 = vsel %vm185, %v169, 0.0
    %v190 = vsel %vm186, %v168, 0.0
    %v191 = vsel %vm187, %v171, 0.0
    %v192 = vld [vmem:[#allocation2] sm:$0xff]
    %v193 = vld [vmem:[#allocation2 + $0x8] sm:$0xff]
    %v194 = vld [vmem:[#allocation2 + $0x10] sm:$0xff]
    %v195 = vld [vmem:[#allocation2 + $0x18] sm:$0xff]
    %v196 = vld [vmem:[#allocation2 + $0x20] sm:$0xff]
    %v197 = vld [vmem:[#allocation2 + $0x28] sm:$0xff]
    %v198 = vld [vmem:[#allocation2 + $0x30] sm:$0xff]
    %v199 = vld [vmem:[#allocation2 + $0x38] sm:$0xff]
    %v200 = vld [vmem:[#allocation2 + $0x40] sm:$0xff]
    %v201 = vld [vmem:[#allocation2 + $0x48] sm:$0xff]
    %v202 = vld [vmem:[#allocation2 + $0x50] sm:$0xff]
    %v203 = vld [vmem:[#allocation2 + $0x58] sm:$0xff]
    %v204 = vld [vmem:[#allocation2 + $0x60] sm:$0xff]
    %v205 = vld [vmem:[#allocation2 + $0x68] sm:$0xff]
    %v206 = vld [vmem:[#allocation2 + $0x70] sm:$0xff]
    %v207 = vld [vmem:[#allocation2 + $0x78] sm:$0xff]
    %v208 = vld [vmem:[#allocation2 + $0x80] sm:$0xff]
    %v209 = vld [vmem:[#allocation2 + $0x88] sm:$0xff]
    %v210 = vld [vmem:[#allocation2 + $0x90] sm:$0xff]
    %v211 = vld [vmem:[#allocation2 + $0x98] sm:$0xff]
    %v212 = vld [vmem:[#allocation2 + $0xa0] sm:$0xff]
    %v213 = vld [vmem:[#allocation2 + $0xa8] sm:$0xff]
    %v214 = vld [vmem:[#allocation2 + $0xb0] sm:$0xff]
    %v215 = vld [vmem:[#allocation2 + $0xb8] sm:$0xff]
    %v216 = vld [vmem:[#allocation2 + $0xc0] sm:$0xff]
    %v217 = vld [vmem:[#allocation2 + $0xc8] sm:$0xff]
    %v218 = vld [vmem:[#allocation2 + $0xd0] sm:$0xff]
    %v219 = vld [vmem:[#allocation2 + $0xd8] sm:$0xff]
    %v220 = vld [vmem:[#allocation2 + $0xe0] sm:$0xff]
    %v221 = vld [vmem:[#allocation2 + $0xe8] sm:$0xff]
    %v222 = vld [vmem:[#allocation2 + $0xf0] sm:$0xff]
    %v223 = vld [vmem:[#allocation2 + $0xf8] sm:$0xff]
    %v224 = vld [vmem:[#allocation2 + $0x100] sm:$0xff]
    %v225 = vld [vmem:[#allocation2 + $0x108] sm:$0xff]
    %v226 = vld [vmem:[#allocation2 + $0x110] sm:$0xff]
    %v227 = vld [vmem:[#allocation2 + $0x118] sm:$0xff]
    %v228 = vld [vmem:[#allocation2 + $0x120] sm:$0xff]
    %v229 = vld [vmem:[#allocation2 + $0x128] sm:$0xff]
    %v230 = vld [vmem:[#allocation2 + $0x130] sm:$0xff]
    %v231 = vld [vmem:[#allocation2 + $0x138] sm:$0xff]
    %v232 = vld [vmem:[#allocation2 + $0x140] sm:$0xff]
    %v233 = vld [vmem:[#allocation2 + $0x148] sm:$0xff]
    %v234 = vld [vmem:[#allocation2 + $0x150] sm:$0xff]
    %v235 = vld [vmem:[#allocation2 + $0x158] sm:$0xff]
    %v236 = vld [vmem:[#allocation2 + $0x160] sm:$0xff]
    %v237 = vld [vmem:[#allocation2 + $0x168] sm:$0xff]
    %v238 = vld [vmem:[#allocation2 + $0x170] sm:$0xff]
    %v239 = vld [vmem:[#allocation2 + $0x178] sm:$0xff]
    %v240 = vld [vmem:[#allocation2 + $0x180] sm:$0xff]
    %v241 = vld [vmem:[#allocation2 + $0x188] sm:$0xff]
    %v242 = vld [vmem:[#allocation2 + $0x190] sm:$0xff]
    %v243 = vld [vmem:[#allocation2 + $0x198] sm:$0xff]
    %v244 = vld [vmem:[#allocation2 + $0x1a0] sm:$0xff]
    %v245 = vld [vmem:[#allocation2 + $0x1a8] sm:$0xff]
    %v246 = vld [vmem:[#allocation2 + $0x1b0] sm:$0xff]
    %v247 = vld [vmem:[#allocation2 + $0x1b8] sm:$0xff]
    %v248 = vld [vmem:[#allocation2 + $0x1c0] sm:$0xff]
    %v249 = vld [vmem:[#allocation2 + $0x1c8] sm:$0xff]
    %v250 = vld [vmem:[#allocation2 + $0x1d0] sm:$0xff]
    %v251 = vld [vmem:[#allocation2 + $0x1d8] sm:$0xff]
    %v252 = vld [vmem:[#allocation2 + $0x1e0] sm:$0xff]
    %v253 = vld [vmem:[#allocation2 + $0x1e8] sm:$0xff]
    %v254 = vld [vmem:[#allocation2 + $0x1f0] sm:$0xff]
    %v255 = vld [vmem:[#allocation2 + $0x1f8] sm:$0xff]
    %v256 = vld [vmem:[#allocation2 + $0x200] sm:$0xff]
    %v257 = vld [vmem:[#allocation2 + $0x208] sm:$0xff]
    %v258 = vld [vmem:[#allocation2 + $0x210] sm:$0xff]
    %v259 = vld [vmem:[#allocation2 + $0x218] sm:$0xff]
    %v260 = vld [vmem:[#allocation2 + $0x220] sm:$0xff]
    %v261 = vld [vmem:[#allocation2 + $0x228] sm:$0xff]
    %v262 = vld [vmem:[#allocation2 + $0x230] sm:$0xff]
    %v263 = vld [vmem:[#allocation2 + $0x238] sm:$0xff]
    %v264 = vld [vmem:[#allocation2 + $0x240] sm:$0xff]
    %v265 = vld [vmem:[#allocation2 + $0x248] sm:$0xff]
    %v266 = vld [vmem:[#allocation2 + $0x250] sm:$0xff]
    %v267 = vld [vmem:[#allocation2 + $0x258] sm:$0xff]
    %v268 = vld [vmem:[#allocation2 + $0x260] sm:$0xff]
    %v269 = vld [vmem:[#allocation2 + $0x268] sm:$0xff]
    %v270 = vld [vmem:[#allocation2 + $0x270] sm:$0xff]
    %v271 = vld [vmem:[#allocation2 + $0x278] sm:$0xff]
    %v272 = vld [vmem:[#allocation2 + $0x280] sm:$0xff]
    %v273 = vld [vmem:[#allocation2 + $0x288] sm:$0xff]
    %v274 = vld [vmem:[#allocation2 + $0x290] sm:$0xff]
    %v275 = vld [vmem:[#allocation2 + $0x298] sm:$0xff]
    %v276 = vld [vmem:[#allocation2 + $0x2a0] sm:$0xff]
    %v277 = vld [vmem:[#allocation2 + $0x2a8] sm:$0xff]
    %v278 = vld [vmem:[#allocation2 + $0x2b0] sm:$0xff]
    %v279 = vld [vmem:[#allocation2 + $0x2b8] sm:$0xff]
    %v280 = vld [vmem:[#allocation2 + $0x2c0] sm:$0xff]
    %v281 = vld [vmem:[#allocation2 + $0x2c8] sm:$0xff]
    %v282 = vld [vmem:[#allocation2 + $0x2d0] sm:$0xff]
    %v283 = vld [vmem:[#allocation2 + $0x2d8] sm:$0xff]
    %v284 = vld [vmem:[#allocation2 + $0x2e0] sm:$0xff]
    %v285 = vld [vmem:[#allocation2 + $0x2e8] sm:$0xff]
    %v286 = vld [vmem:[#allocation2 + $0x2f0] sm:$0xff]
    %v287 = vld [vmem:[#allocation2 + $0x2f8] sm:$0xff]
    %v288 = vld [vmem:[%s2] sm:$0x3]
    %v290 = vlaneseq
    %v291 = vshrl.u32 %v290, 7
    %v292 = vsub.s32 0, %v291
    %v293 = vrot.slane %v288, %v292
    %v294 = vlaneseq
    %v295 = vshrl.u32 %v294, 7
    %v296 = vsub.s32 1, %v295
    %v297 = vrot.slane %v288, %v296
    %300 = vmatprep.subr.mxu0 %v193
    %301 = vmatpush1.msra.mxu0 %v192
    %302 = vmatprep.subr.mxu0 %v195
    %303 = vmatpush1.msra.mxu0 %v194
    %304 = vmatprep.subr.mxu0 %v197
    %305 = vmatpush1.msra.mxu0 %v196
    %306 = vmatprep.subr.mxu0 %v199
    %307 = vmatpush1.msra.mxu0 %v198
    %308 = vmatprep.subr.mxu0 %v201
    %309 = vmatpush1.msra.mxu0 %v200
    %310 = vmatprep.subr.mxu0 %v203
    %311 = vmatpush1.msra.mxu0 %v202
    %312 = vmatprep.subr.mxu0 %v205
    %313 = vmatpush1.msra.mxu0 %v204
    %314 = vmatprep.subr.mxu0 %v207
    %315 = vmatpush1.msra.mxu0 %v206
    %316 = vmatprep.subr.mxu0 %v209
    %317 = vmatpush1.msra.mxu0 %v208
    %318 = vmatprep.subr.mxu0 %v211
    %319 = vmatpush1.msra.mxu0 %v210
    %320 = vmatprep.subr.mxu0 %v213
    %321 = vmatpush1.msra.mxu0 %v212
    %322 = vmatprep.subr.mxu0 %v215
    %323 = vmatpush1.msra.mxu0 %v214
    %324 = vmatprep.subr.mxu0 %v217
    %325 = vmatpush1.msra.mxu0 %v216
    %326 = vmatprep.subr.mxu0 %v219
    %327 = vmatpush1.msra.mxu0 %v218
    %328 = vmatprep.subr.mxu0 %v221
    %329 = vmatpush1.msra.mxu0 %v220
    %330 = vmatprep.subr.mxu0 %v223
    %331 = vmatpush1.msra.mxu0 %v222
    %332 = vmatprep.subr.mxu0 %v225
    %333 = vmatpush1.msra.mxu0 %v224
    %334 = vmatprep.subr.mxu0 %v227
    %335 = vmatpush1.msra.mxu0 %v226
    %336 = vmatprep.subr.mxu0 %v229
    %337 = vmatpush1.msra.mxu0 %v228
    %338 = vmatprep.subr.mxu0 %v231
    %339 = vmatpush1.msra.mxu0 %v230
    %340 = vmatprep.subr.mxu0 %v233
    %341 = vmatpush1.msra.mxu0 %v232
    %342 = vmatprep.subr.mxu0 %v235
    %343 = vmatpush1.msra.mxu0 %v234
    %344 = vmatprep.subr.mxu0 %v237
    %345 = vmatpush1.msra.mxu0 %v236
    %346 = vmatprep.subr.mxu0 %v239
    %347 = vmatpush1.msra.mxu0 %v238
    %348 = vmatprep.subr.mxu0 %v241
    %349 = vmatpush1.msra.mxu0 %v240
    %350 = vmatprep.subr.mxu0 %v243
    %351 = vmatpush1.msra.mxu0 %v242
    %352 = vmatprep.subr.mxu0 %v245
    %353 = vmatpush1.msra.mxu0 %v244
    %354 = vmatprep.subr.mxu0 %v247
    %355 = vmatpush1.msra.mxu0 %v246
    %356 = vmatprep.subr.mxu0 %v249
    %357 = vmatpush1.msra.mxu0 %v248
    %358 = vmatprep.subr.mxu0 %v251
    %359 = vmatpush1.msra.mxu0 %v250
    %360 = vmatprep.subr.mxu0 %v253
    %361 = vmatpush1.msra.mxu0 %v252
    %362 = vmatprep.subr.mxu0 %v255
    %363 = vmatpush1.msra.mxu0 %v254
    %364 = vmatprep.mubr.f32.mxu0 %v121
    %365 = vmatmul.mubr.f32.gmra.mrb[0].mxu0 %v159
    %v366 = vpop.f32.mrb[0].mxu0
    %v367 = vadd.f32 %v293, %v366
    %v368 = vpop.f32.mrb[0].mxu0
    %v369 = vadd.f32 %v297, %v368
    %370 = vmatprep.mubr.f32.mxu0 %v122
    %371 = vmatmul.mubr.f32.gmra.mrb[0].mxu0 %v160
    %v372 = vpop.f32.mrb[0].mxu0
    %v373 = vadd.f32 %v293, %v372
    %v374 = vpop.f32.mrb[0].mxu0
    %v375 = vadd.f32 %v297, %v374
    %376 = vmatprep.mubr.f32.mxu0 %v123
    %377 = vmatmul.mubr.f32.gmra.mrb[0].mxu0 %v161
    %v378 = vpop.f32.mrb[0].mxu0
    %v379 = vadd.f32 %v293, %v378
    %v380 = vpop.f32.mrb[0].mxu0
    %v381 = vadd.f32 %v297, %v380
    %382 = vmatprep.mubr.f32.mxu0 %v124
    %383 = vmatmul.mubr.f32.gmra.mrb[0].mxu0 %v162
    %v384 = vpop.f32.mrb[0].mxu0
    %v385 = vadd.f32 %v293, %v384
    %v386 = vpop.f32.mrb[0].mxu0
    %v387 = vadd.f32 %v297, %v386
    %388 = vdwg.mxu0
    %389 = vmatprep.subr.mxu0 %v257
    %390 = vmatpush1.msra.mxu0 %v256
    %391 = vmatprep.subr.mxu0 %v259
    %392 = vmatpush1.msra.mxu0 %v258
    %393 = vmatprep.subr.mxu0 %v261
    %394 = vmatpush1.msra.mxu0 %v260
    %395 = vmatprep.subr.mxu0 %v263
    %396 = vmatpush1.msra.mxu0 %v262
    %397 = vmatprep.subr.mxu0 %v265
    %398 = vmatpush1.msra.mxu0 %v264
    %399 = vmatprep.subr.mxu0 %v267
    %400 = vmatpush1.msra.mxu0 %v266
    %401 = vmatprep.subr.mxu0 %v269
    %402 = vmatpush1.msra.mxu0 %v268
    %403 = vmatprep.subr.mxu0 %v271
    %404 = vmatpush1.msra.mxu0 %v270
    %405 = vmatprep.subr.mxu0 %v273
    %406 = vmatpush1.msra.mxu0 %v272
    %407 = vmatprep.subr.mxu0 %v275
    %408 = vmatpush1.msra.mxu0 %v274
    %409 = vmatprep.subr.mxu0 %v277
    %410 = vmatpush1.msra.mxu0 %v276
    %411 = vmatprep.subr.mxu0 %v279
    %412 = vmatpush1.msra.mxu0 %v278
    %413 = vmatprep.subr.mxu0 %v281
    %414 = vmatpush1.msra.mxu0 %v280
    %415 = vmatprep.subr.mxu0 %v283
    %416 = vmatpush1.msra.mxu0 %v282
    %417 = vmatprep.subr.mxu0 %v285
    %418 = vmatpush1.msra.mxu0 %v284
    %419 = vmatprep.subr.mxu0 %v287
    %420 = vmatpush1.msra.mxu0 %v286
    %421 = vmatprep.subr.mxu0 0.0
    %422 = vmatpush1.msra.mxu0 0.0
    %423 = vmatprep.subr.mxu0 0.0
    %424 = vmatpush1.msra.mxu0 0.0
    %425 = vmatprep.subr.mxu0 0.0
    %426 = vmatpush1.msra.mxu0 0.0
    %427 = vmatprep.subr.mxu0 0.0
    %428 = vmatpush1.msra.mxu0 0.0
    %429 = vmatprep.subr.mxu0 0.0
    %430 = vmatpush1.msra.mxu0 0.0
    %431 = vmatprep.subr.mxu0 0.0
    %432 = vmatpush1.msra.mxu0 0.0
    %433 = vmatprep.subr.mxu0 0.0
    %434 = vmatpush1.msra.mxu0 0.0
    %435 = vmatprep.subr.mxu0 0.0
    %436 = vmatpush1.msra.mxu0 0.0
    %437 = vmatprep.subr.mxu0 0.0
    %438 = vmatpush1.msra.mxu0 0.0
    %439 = vmatprep.subr.mxu0 0.0
    %440 = vmatpush1.msra.mxu0 0.0
    %441 = vmatprep.subr.mxu0 0.0
    %442 = vmatpush1.msra.mxu0 0.0
    %443 = vmatprep.subr.mxu0 0.0
    %444 = vmatpush1.msra.mxu0 0.0
    %445 = vmatprep.subr.mxu0 0.0
    %446 = vmatpush1.msra.mxu0 0.0
    %447 = vmatprep.subr.mxu0 0.0
    %448 = vmatpush1.msra.mxu0 0.0
    %449 = vmatprep.subr.mxu0 0.0
    %450 = vmatpush1.msra.mxu0 0.0
    %451 = vmatprep.subr.mxu0 0.0
    %452 = vmatpush1.msra.mxu0 0.0
    %453 = vmatprep.mubr.f32.mxu0 0.0
    %454 = vmatmul.mubr.f32.gmra.mrb[0].mxu0 %v188
    %v455 = vpop.f32.mrb[0].mxu0
    %v456 = vadd.f32 %v367, %v455
    %v457 = vpop.f32.mrb[0].mxu0
    %v458 = vadd.f32 %v369, %v457
    %459 = vmatprep.mubr.f32.mxu0 0.0
    %460 = vmatmul.mubr.f32.gmra.mrb[0].mxu0 %v189
    %v461 = vpop.f32.mrb[0].mxu0
    %v462 = vadd.f32 %v373, %v461
    %v463 = vpop.f32.mrb[0].mxu0
    %v464 = vadd.f32 %v375, %v463
    %465 = vmatprep.mubr.f32.mxu0 0.0
    %466 = vmatmul.mubr.f32.gmra.mrb[0].mxu0 %v190
    %v467 = vpop.f32.mrb[0].mxu0
    %v468 = vadd.f32 %v379, %v467
    %v469 = vpop.f32.mrb[0].mxu0
    %v470 = vadd.f32 %v381, %v469
    %471 = vmatprep.mubr.f32.mxu0 0.0
    %472 = vmatmul.mubr.f32.gmra.mrb[0].mxu0 %v191
    %v473 = vpop.f32.mrb[0].mxu0
    %v474 = vadd.f32 %v385, %v473
    %v475 = vpop.f32.mrb[0].mxu0
    %v476 = vadd.f32 %v387, %v475
    %477 = vdwg.mxu0
    %v478 = vld [vmem:[%s3] sm:$0xff]
    %v479 = vld [vmem:[%s3 + $0x8] sm:$0xff]
    %v480 = vld [vmem:[%s3 + $0x10] sm:$0xff]
    %v481 = vld [vmem:[%s3 + $0x18] sm:$0xff]
    %v482 = vld [vmem:[%s3 + $0x20] sm:$0xff]
    %v483 = vld [vmem:[%s3 + $0x28] sm:$0xff]
    %v484 = vld [vmem:[%s3 + $0x30] sm:$0xff]
    %v485 = vld [vmem:[%s3 + $0x38] sm:$0xff]
    %v486 = vld [vmem:[%s3 + $0x40] sm:$0xff]
    %v487 = vld [vmem:[%s3 + $0x48] sm:$0xff]
    %v488 = vld [vmem:[%s3 + $0x50] sm:$0xff]
    %v489 = vld [vmem:[%s3 + $0x58] sm:$0xff]
    %v490 = vld [vmem:[%s3 + $0x60] sm:$0xff]
    %v491 = vld [vmem:[%s3 + $0x68] sm:$0xff]
    %v492 = vld [vmem:[%s3 + $0x70] sm:$0xff]
    %v493 = vld [vmem:[%s3 + $0x78] sm:$0xff]
    %v494 = vld [vmem:[%s3 + $0x80] sm:$0xff]
    %v495 = vld [vmem:[%s3 + $0x88] sm:$0xff]
    %v496 = vld [vmem:[%s3 + $0x90] sm:$0xff]
    %v497 = vld [vmem:[%s3 + $0x98] sm:$0xff]
    %v498 = vld [vmem:[%s3 + $0xa0] sm:$0xff]
    %v499 = vld [vmem:[%s3 + $0xa8] sm:$0xff]
    %v500 = vld [vmem:[%s3 + $0xb0] sm:$0xff]
    %v501 = vld [vmem:[%s3 + $0xb8] sm:$0xff]
    %v502 = vld [vmem:[%s3 + $0xc0] sm:$0xff]
    %v503 = vld [vmem:[%s3 + $0xc8] sm:$0xff]
    %v504 = vld [vmem:[%s3 + $0xd0] sm:$0xff]
    %v505 = vld [vmem:[%s3 + $0xd8] sm:$0xff]
    %v506 = vld [vmem:[%s3 + $0xe0] sm:$0xff]
    %v507 = vld [vmem:[%s3 + $0xe8] sm:$0xff]
    %v508 = vld [vmem:[%s3 + $0xf0] sm:$0xff]
    %v509 = vld [vmem:[%s3 + $0xf8] sm:$0xff]
    %510 = vmatprep.subr.mxu0 0.0
    %511 = vmatpush1.msra.mxu0 %v478
    %512 = vmatprep.subr.mxu0 0.0
    %513 = vmatpush1.msra.mxu0 %v479
    %514 = vmatprep.subr.mxu0 0.0
    %515 = vmatpush1.msra.mxu0 %v480
    %516 = vmatprep.subr.mxu0 0.0
    %517 = vmatpush1.msra.mxu0 %v481
    %518 = vmatprep.subr.mxu0 0.0
    %519 = vmatpush1.msra.mxu0 %v482
    %520 = vmatprep.subr.mxu0 0.0
    %521 = vmatpush1.msra.mxu0 %v483
    %522 = vmatprep.subr.mxu0 0.0
    %523 = vmatpush1.msra.mxu0 %v484
    %524 = vmatprep.subr.mxu0 0.0
    %525 = vmatpush1.msra.mxu0 %v485
    %526 = vmatprep.subr.mxu0 0.0
    %527 = vmatpush1.msra.mxu0 %v486
    %528 = vmatprep.subr.mxu0 0.0
    %529 = vmatpush1.msra.mxu0 %v487
    %530 = vmatprep.subr.mxu0 0.0
    %531 = vmatpush1.msra.mxu0 %v488
    %532 = vmatprep.subr.mxu0 0.0
    %533 = vmatpush1.msra.mxu0 %v489
    %534 = vmatprep.subr.mxu0 0.0
    %535 = vmatpush1.msra.mxu0 %v490
    %536 = vmatprep.subr.mxu0 0.0
    %537 = vmatpush1.msra.mxu0 %v491
    %538 = vmatprep.subr.mxu0 0.0
    %539 = vmatpush1.msra.mxu0 %v492
    %540 = vmatprep.subr.mxu0 0.0
    %541 = vmatpush1.msra.mxu0 %v493
    %542 = vmatprep.subr.mxu0 0.0
    %543 = vmatpush1.msra.mxu0 %v494
    %544 = vmatprep.subr.mxu0 0.0
    %545 = vmatpush1.msra.mxu0 %v495
    %546 = vmatprep.subr.mxu0 0.0
    %547 = vmatpush1.msra.mxu0 %v496
    %548 = vmatprep.subr.mxu0 0.0
    %549 = vmatpush1.msra.mxu0 %v497
    %550 = vmatprep.subr.mxu0 0.0
    %551 = vmatpush1.msra.mxu0 %v498
    %552 = vmatprep.subr.mxu0 0.0
    %553 = vmatpush1.msra.mxu0 %v499
    %554 = vmatprep.subr.mxu0 0.0
    %555 = vmatpush1.msra.mxu0 %v500
    %556 = vmatprep.subr.mxu0 0.0
    %557 = vmatpush1.msra.mxu0 %v501
    %558 = vmatprep.subr.mxu0 0.0
    %559 = vmatpush1.msra.mxu0 %v502
    %560 = vmatprep.subr.mxu0 0.0
    %561 = vmatpush1.msra.mxu0 %v503
    %562 = vmatprep.subr.mxu0 0.0
    %563 = vmatpush1.msra.mxu0 %v504
    %564 = vmatprep.subr.mxu0 0.0
    %565 = vmatpush1.msra.mxu0 %v505
    %566 = vmatprep.subr.mxu0 0.0
    %567 = vmatpush1.msra.mxu0 %v506
    %568 = vmatprep.subr.mxu0 0.0
    %569 = vmatpush1.msra.mxu0 %v507
    %570 = vmatprep.subr.mxu0 0.0
    %571 = vmatpush1.msra.mxu0 %v508
    %572 = vmatprep.subr.mxu0 0.0
    %573 = vmatpush1.msra.mxu0 %v509
    %574 = vmatprep.mubr.f32.mxu0 %v458
    %575 = vmatmul.mubr.f32.gmra.mrb[0].mxu0 %v456
    %v576 = vpop.f32.mrb[0].mxu0
    %v577 = vadd.f32 0.0, %v576
    %v578 = vpop.f32.mrb[0].mxu0
    %579 = vmatprep.mubr.f32.mxu0 %v464
    %580 = vmatmul.mubr.f32.gmra.mrb[0].mxu0 %v462
    %v581 = vpop.f32.mrb[0].mxu0
    %v582 = vadd.f32 0.0, %v581
    %v583 = vpop.f32.mrb[0].mxu0
    %584 = vmatprep.mubr.f32.mxu0 %v470
    %585 = vmatmul.mubr.f32.gmra.mrb[0].mxu0 %v468
    %v586 = vpop.f32.mrb[0].mxu0
    %v587 = vadd.f32 0.0, %v586
    %v588 = vpop.f32.mrb[0].mxu0
    %589 = vmatprep.mubr.f32.mxu0 %v476
    %590 = vmatmul.mubr.f32.gmra.mrb[0].mxu0 %v474
    %v591 = vpop.f32.mrb[0].mxu0
    %v592 = vadd.f32 0.0, %v591
    %v593 = vpop.f32.mrb[0].mxu0
    %594 = vdwg.mxu0
    %vm595 = vcmask 130048
    %v596 = vsel %vm595, %v577, 0.0
    %v597 = vsel %vm595, %v582, 0.0
    %v598 = vadd.f32 %v596, %v597
    %v599 = vsel %vm595, %v587, 0.0
    %v600 = vadd.f32 %v598, %v599
    %v601 = vsel %vm595, %v592, 0.0
    %v602 = vadd.f32 %v600, %v601
    %v603 = vrot.slane %v602, 4
    %v604 = vadd.f32 %v602, %v603
    %v605 = vrot.slane %v604, 2
    %v606 = vadd.f32 %v604, %v605
    %v607 = vrot.slane %v606, 1
    %v608 = vadd.f32 %v606, %v607
    %v609 = vmul.f32 %v456, %v456
    %v610 = vmul.f32 %v458, %v458
    %v611 = vmul.f32 %v462, %v462
    %v612 = vmul.f32 %v464, %v464
    %v613 = vmul.f32 %v468, %v468
    %v614 = vmul.f32 %v470, %v470
    %v615 = vmul.f32 %v474, %v474
    %v616 = vmul.f32 %v476, %v476
    %617 = vmatprep.subr.mxu0 0.0
    %618 = vmatpush1.msra.mxu0 %v478
    %619 = vmatprep.subr.mxu0 0.0
    %620 = vmatpush1.msra.mxu0 %v479
    %621 = vmatprep.subr.mxu0 0.0
    %622 = vmatpush1.msra.mxu0 %v480
    %623 = vmatprep.subr.mxu0 0.0
    %624 = vmatpush1.msra.mxu0 %v481
    %625 = vmatprep.subr.mxu0 0.0
    %626 = vmatpush1.msra.mxu0 %v482
    %627 = vmatprep.subr.mxu0 0.0
    %628 = vmatpush1.msra.mxu0 %v483
    %629 = vmatprep.subr.mxu0 0.0
    %630 = vmatpush1.msra.mxu0 %v484
    %631 = vmatprep.subr.mxu0 0.0
    %632 = vmatpush1.msra.mxu0 %v485
    %633 = vmatprep.subr.mxu0 0.0
    %634 = vmatpush1.msra.mxu0 %v486
    %635 = vmatprep.subr.mxu0 0.0
    %636 = vmatpush1.msra.mxu0 %v487
    %637 = vmatprep.subr.mxu0 0.0
    %638 = vmatpush1.msra.mxu0 %v488
    %639 = vmatprep.subr.mxu0 0.0
    %640 = vmatpush1.msra.mxu0 %v489
    %641 = vmatprep.subr.mxu0 0.0
    %642 = vmatpush1.msra.mxu0 %v490
    %643 = vmatprep.subr.mxu0 0.0
    %644 = vmatpush1.msra.mxu0 %v491
    %645 = vmatprep.subr.mxu0 0.0
    %646 = vmatpush1.msra.mxu0 %v492
    %647 = vmatprep.subr.mxu0 0.0
    %648 = vmatpush1.msra.mxu0 %v493
    %649 = vmatprep.subr.mxu0 0.0
    %650 = vmatpush1.msra.mxu0 %v494
    %651 = vmatprep.subr.mxu0 0.0
    %652 = vmatpush1.msra.mxu0 %v495
    %653 = vmatprep.subr.mxu0 0.0
    %654 = vmatpush1.msra.mxu0 %v496
    %655 = vmatprep.subr.mxu0 0.0
    %656 = vmatpush1.msra.mxu0 %v497
    %657 = vmatprep.subr.mxu0 0.0
    %658 = vmatpush1.msra.mxu0 %v498
    %659 = vmatprep.subr.mxu0 0.0
    %660 = vmatpush1.msra.mxu0 %v499
    %661 = vmatprep.subr.mxu0 0.0
    %662 = vmatpush1.msra.mxu0 %v500
    %663 = vmatprep.subr.mxu0 0.0
    %664 = vmatpush1.msra.mxu0 %v501
    %665 = vmatprep.subr.mxu0 0.0
    %666 = vmatpush1.msra.mxu0 %v502
    %667 = vmatprep.subr.mxu0 0.0
    %668 = vmatpush1.msra.mxu0 %v503
    %669 = vmatprep.subr.mxu0 0.0
    %670 = vmatpush1.msra.mxu0 %v504
    %671 = vmatprep.subr.mxu0 0.0
    %672 = vmatpush1.msra.mxu0 %v505
    %673 = vmatprep.subr.mxu0 0.0
    %674 = vmatpush1.msra.mxu0 %v506
    %675 = vmatprep.subr.mxu0 0.0
    %676 = vmatpush1.msra.mxu0 %v507
    %677 = vmatprep.subr.mxu0 0.0
    %678 = vmatpush1.msra.mxu0 %v508
    %679 = vmatprep.subr.mxu0 0.0
    %680 = vmatpush1.msra.mxu0 %v509
    %681 = vmatprep.mubr.f32.mxu0 %v610
    %682 = vmatmul.mubr.f32.gmra.mrb[0].mxu0 %v609
    %v683 = vpop.f32.mrb[0].mxu0
    %v684 = vadd.f32 0.0, %v683
    %v685 = vpop.f32.mrb[0].mxu0
    %686 = vmatprep.mubr.f32.mxu0 %v612
    %687 = vmatmul.mubr.f32.gmra.mrb[0].mxu0 %v611
    %v688 = vpop.f32.mrb[0].mxu0
    %v689 = vadd.f32 0.0, %v688
    %v690 = vpop.f32.mrb[0].mxu0
    %691 = vmatprep.mubr.f32.mxu0 %v614
    %692 = vmatmul.mubr.f32.gmra.mrb[0].mxu0 %v613
    %v693 = vpop.f32.mrb[0].mxu0
    %v694 = vadd.f32 0.0, %v693
    %v695 = vpop.f32.mrb[0].mxu0
    %696 = vmatprep.mubr.f32.mxu0 %v616
    %697 = vmatmul.mubr.f32.gmra.mrb[0].mxu0 %v615
    %v698 = vpop.f32.mrb[0].mxu0
    %v699 = vadd.f32 0.0, %v698
    %v700 = vpop.f32.mrb[0].mxu0
    %701 = vdwg.mxu0
    %v702 = vsel %vm595, %v684, 0.0
    %v703 = vsel %vm595, %v689, 0.0
    %v704 = vadd.f32 %v702, %v703
    %v705 = vsel %vm595, %v694, 0.0
    %v706 = vadd.f32 %v704, %v705
    %v707 = vsel %vm595, %v699, 0.0
    %v708 = vadd.f32 %v706, %v707
    %v709 = vrot.slane %v708, 4
    %v710 = vadd.f32 %v708, %v709
    %v711 = vrot.slane %v710, 2
    %v712 = vadd.f32 %v710, %v711
    %v713 = vrot.slane %v712, 1
    %v714 = vadd.f32 %v712, %v713
    %v715 = vmul.f32 %v608, 0.001953125
    %v716 = vmul.f32 %v714, 0.001953125
    %v717 = vmul.f32 %v715, %v715
    %v718 = vsub.f32 %v716, %v717
    %v719 = vmax.f32 %v718, 0.0
    %v720 = vld [vmem:[#allocation5] sm:$0x1]
    %v721 = vadd.f32 %v719, 1e-05
    %v722 = vrsqrt.pop %v721
    %v723 = vmul.f32 %v720, %v722
    %v724 = vld [vmem:[#allocation7] sm:$0x1]
    %v725 = vmul.f32 %v715, %v723
    %v726 = vsub.f32 %v724, %v725
    %v727 = vld [vmem:[%s4] sm:$0xff]
    %v728 = vld [vmem:[%s4 + $0x8] sm:$0xff]
    %v729 = vld [vmem:[%s4 + $0x10] sm:$0xff]
    %v730 = vld [vmem:[%s4 + $0x18] sm:$0xff]
    %v732 = vsel %vm595, %v723, 0
    %734 = vmatprep.subr.mxu0 %v728
    %735 = vmatpush1.msra.mxu0 %v727
    %736 = vmatprep.subr.mxu0 %v730
    %737 = vmatpush1.msra.mxu0 %v729
    %738 = vmatprep.subr.mxu0 0.0
    %739 = vmatpush1.msra.mxu0 0.0
    %740 = vmatprep.subr.mxu0 0.0
    %741 = vmatpush1.msra.mxu0 0.0
    %742 = vmatprep.subr.mxu0 0.0
    %743 = vmatpush1.msra.mxu0 0.0
    %744 = vmatprep.subr.mxu0 0.0
    %745 = vmatpush1.msra.mxu0 0.0
    %746 = vmatprep.subr.mxu0 0.0
    %747 = vmatpush1.msra.mxu0 0.0
    %748 = vmatprep.subr.mxu0 0.0
    %749 = vmatpush1.msra.mxu0 0.0
    %750 = vmatprep.subr.mxu0 0.0
    %751 = vmatpush1.msra.mxu0 0.0
    %752 = vmatprep.subr.mxu0 0.0
    %753 = vmatpush1.msra.mxu0 0.0
    %754 = vmatprep.subr.mxu0 0.0
    %755 = vmatpush1.msra.mxu0 0.0
    %756 = vmatprep.subr.mxu0 0.0
    %757 = vmatpush1.msra.mxu0 0.0
    %758 = vmatprep.subr.mxu0 0.0
    %759 = vmatpush1.msra.mxu0 0.0
    %760 = vmatprep.subr.mxu0 0.0
    %761 = vmatpush1.msra.mxu0 0.0
    %762 = vmatprep.subr.mxu0 0.0
    %763 = vmatpush1.msra.mxu0 0.0
    %764 = vmatprep.subr.mxu0 0.0
    %765 = vmatpush1.msra.mxu0 0.0
    %766 = vmatprep.subr.mxu0 0.0
    %767 = vmatpush1.msra.mxu0 0.0
    %768 = vmatprep.subr.mxu0 0.0
    %769 = vmatpush1.msra.mxu0 0.0
    %770 = vmatprep.subr.mxu0 0.0
    %771 = vmatpush1.msra.mxu0 0.0
    %772 = vmatprep.subr.mxu0 0.0
    %773 = vmatpush1.msra.mxu0 0.0
    %774 = vmatprep.subr.mxu0 0.0
    %775 = vmatpush1.msra.mxu0 0.0
    %776 = vmatprep.subr.mxu0 0.0
    %777 = vmatpush1.msra.mxu0 0.0
    %778 = vmatprep.subr.mxu0 0.0
    %779 = vmatpush1.msra.mxu0 0.0
    %780 = vmatprep.subr.mxu0 0.0
    %781 = vmatpush1.msra.mxu0 0.0
    %782 = vmatprep.subr.mxu0 0.0
    %783 = vmatpush1.msra.mxu0 0.0
    %784 = vmatprep.subr.mxu0 0.0
    %785 = vmatpush1.msra.mxu0 0.0
    %786 = vmatprep.subr.mxu0 0.0
    %787 = vmatpush1.msra.mxu0 0.0
    %788 = vmatprep.subr.mxu0 0.0
    %789 = vmatpush1.msra.mxu0 0.0
    %790 = vmatprep.subr.mxu0 0.0
    %791 = vmatpush1.msra.mxu0 0.0
    %792 = vmatprep.subr.mxu0 0.0
    %793 = vmatpush1.msra.mxu0 0.0
    %794 = vmatprep.subr.mxu0 0.0
    %795 = vmatpush1.msra.mxu0 0.0
    %796 = vmatprep.subr.mxu0 0.0
    %797 = vmatpush1.msra.mxu0 0.0
    %798 = vmatprep.mubr.f32.mxu0 0.0
    %799 = vmatmul.mubr.f32.gmra.mrb[0].mxu0 %v732
    %v800 = vpop.f32.mrb[0].mxu0
    %v801 = vadd.f32 0.0, %v800
    %v802 = vpop.f32.mrb[0].mxu0
    %v803 = vadd.f32 0.0, %v802
    %804 = vdwg.mxu0
    %v806 = vsel %vm595, %v726, 0
    %808 = vmatprep.subr.mxu0 %v728
    %809 = vmatpush1.msra.mxu0 %v727
    %810 = vmatprep.subr.mxu0 %v730
    %811 = vmatpush1.msra.mxu0 %v729
    %812 = vmatprep.subr.mxu0 0.0
    %813 = vmatpush1.msra.mxu0 0.0
    %814 = vmatprep.subr.mxu0 0.0
    %815 = vmatpush1.msra.mxu0 0.0
    %816 = vmatprep.subr.mxu0 0.0
    %817 = vmatpush1.msra.mxu0 0.0
    %818 = vmatprep.subr.mxu0 0.0
    %819 = vmatpush1.msra.mxu0 0.0
    %820 = vmatprep.subr.mxu0 0.0
    %821 = vmatpush1.msra.mxu0 0.0
    %822 = vmatprep.subr.mxu0 0.0
    %823 = vmatpush1.msra.mxu0 0.0
    %824 = vmatprep.subr.mxu0 0.0
    %825 = vmatpush1.msra.mxu0 0.0
    %826 = vmatprep.subr.mxu0 0.0
    %827 = vmatpush1.msra.mxu0 0.0
    %828 = vmatprep.subr.mxu0 0.0
    %829 = vmatpush1.msra.mxu0 0.0
    %830 = vmatprep.subr.mxu0 0.0
    %831 = vmatpush1.msra.mxu0 0.0
    %832 = vmatprep.subr.mxu0 0.0
    %833 = vmatpush1.msra.mxu0 0.0
    %834 = vmatprep.subr.mxu0 0.0
    %835 = vmatpush1.msra.mxu0 0.0
    %836 = vmatprep.subr.mxu0 0.0
    %837 = vmatpush1.msra.mxu0 0.0
    %838 = vmatprep.subr.mxu0 0.0
    %839 = vmatpush1.msra.mxu0 0.0
    %840 = vmatprep.subr.mxu0 0.0
    %841 = vmatpush1.msra.mxu0 0.0
    %842 = vmatprep.subr.mxu0 0.0
    %843 = vmatpush1.msra.mxu0 0.0
    %844 = vmatprep.subr.mxu0 0.0
    %845 = vmatpush1.msra.mxu0 0.0
    %846 = vmatprep.subr.mxu0 0.0
    %847 = vmatpush1.msra.mxu0 0.0
    %848 = vmatprep.subr.mxu0 0.0
    %849 = vmatpush1.msra.mxu0 0.0
    %850 = vmatprep.subr.mxu0 0.0
    %851 = vmatpush1.msra.mxu0 0.0
    %852 = vmatprep.subr.mxu0 0.0
    %853 = vmatpush1.msra.mxu0 0.0
    %854 = vmatprep.subr.mxu0 0.0
    %855 = vmatpush1.msra.mxu0 0.0
    %856 = vmatprep.subr.mxu0 0.0
    %857 = vmatpush1.msra.mxu0 0.0
    %858 = vmatprep.subr.mxu0 0.0
    %859 = vmatpush1.msra.mxu0 0.0
    %860 = vmatprep.subr.mxu0 0.0
    %861 = vmatpush1.msra.mxu0 0.0
    %862 = vmatprep.subr.mxu0 0.0
    %863 = vmatpush1.msra.mxu0 0.0
    %864 = vmatprep.subr.mxu0 0.0
    %865 = vmatpush1.msra.mxu0 0.0
    %866 = vmatprep.subr.mxu0 0.0
    %867 = vmatpush1.msra.mxu0 0.0
    %868 = vmatprep.subr.mxu0 0.0
    %869 = vmatpush1.msra.mxu0 0.0
    %870 = vmatprep.subr.mxu0 0.0
    %871 = vmatpush1.msra.mxu0 0.0
    %872 = vmatprep.mubr.f32.mxu0 0.0
    %873 = vmatmul.mubr.f32.gmra.mrb[0].mxu0 %v806
    %v874 = vpop.f32.mrb[0].mxu0
    %v875 = vadd.f32 0.0, %v874
    %v876 = vpop.f32.mrb[0].mxu0
    %v877 = vadd.f32 0.0, %v876
    %878 = vdwg.mxu0
    %v879 = vlaneseq
    %v880 = vshrl.u32 %v879, 7
    %v881 = vsub.s32 0, %v880
    %v882 = vrot.slane %v801, %v881
    %v883 = vlaneseq
    %v884 = vshrl.u32 %v883, 7
    %v885 = vsub.s32 0, %v884
    %v886 = vrot.slane %v803, %v885
    %v887 = vmul.f32 %v456, %v882
    %v888 = vmul.f32 %v458, %v886
    %v889 = vmul.f32 %v462, %v882
    %v890 = vmul.f32 %v464, %v886
    %v891 = vmul.f32 %v468, %v882
    %v892 = vmul.f32 %v470, %v886
    %v893 = vmul.f32 %v474, %v882
    %v894 = vmul.f32 %v476, %v886
    %v895 = vlaneseq
    %v896 = vshrl.u32 %v895, 7
    %v897 = vsub.s32 0, %v896
    %v898 = vrot.slane %v875, %v897
    %v899 = vlaneseq
    %v900 = vshrl.u32 %v899, 7
    %v901 = vsub.s32 0, %v900
    %v902 = vrot.slane %v877, %v901
    %v903 = vadd.f32 %v887, %v898
    %v904 = vadd.f32 %v888, %v902
    %v905 = vadd.f32 %v889, %v898
    %v906 = vadd.f32 %v890, %v902
    %v907 = vadd.f32 %v891, %v898
    %v908 = vadd.f32 %v892, %v902
    %v909 = vadd.f32 %v893, %v898
    %v910 = vadd.f32 %v894, %v902
    %vm911 = vcmp.ge.f32.partialorder %v903, 0.0
    %vm912 = vcmp.ge.f32.partialorder %v905, 0.0
    %vm913 = vcmp.ge.f32.partialorder %v907, 0.0
    %vm914 = vcmp.ge.f32.partialorder %v909, 0.0
    %v915 = vmul.f32 %v903, 0.01
    %v916 = vmul.f32 %v905, 0.01
    %v917 = vmul.f32 %v907, 0.01
    %v918 = vmul.f32 %v909, 0.01
    %v919 = vsel %vm911, %v903, %v915
    %v920 = vsel %vm912, %v905, %v916
    %v921 = vsel %vm913, %v907, %v917
    %v922 = vsel %vm914, %v909, %v918
    %v923 = vrot.slane %v919, 7
    %v924 = vrot.slane %v920, 7
    %v925 = vrot.slane %v921, 7
    %v926 = vrot.slane %v922, 7
    %v927 = vsel %vm138, %v925, %v926
    %v928 = vsel %vm138, %v924, %v925
    %v929 = vsel %vm138, %v923, %v924
    %v930 = vsel %vm138, %v926, %v923
    %v931 = vsel %vm155, %v930, 0.0
    %v932 = vsel %vm156, %v929, 0.0
    %v933 = vsel %vm157, %v928, 0.0
    %v934 = vsel %vm158, %v927, 0.0
    %v935 = vrot.slane %v919, 1
    %v936 = vrot.slane %v920, 1
    %v937 = vrot.slane %v921, 1
    %v938 = vrot.slane %v922, 1
    %v939 = vsel %vm167, %v937, %v938
    %v940 = vsel %vm167, %v936, %v937
    %v941 = vsel %vm167, %v935, %v936
    %v942 = vsel %vm167, %v938, %v935
    %v943 = vsel %vm184, %v941, 0.0
    %v944 = vsel %vm185, %v940, 0.0
    %v945 = vsel %vm186, %v939, 0.0
    %v946 = vsel %vm187, %v942, 0.0
    %v947 = vld [vmem:[%s7] sm:$0xff]
    %v948 = vld [vmem:[%s7 + $0x8] sm:$0xff]
    %v949 = vld [vmem:[%s7 + $0x10] sm:$0xff]
    %v950 = vld [vmem:[%s7 + $0x18] sm:$0xff]
    %v951 = vld [vmem:[%s7 + $0x20] sm:$0xff]
    %v952 = vld [vmem:[%s7 + $0x28] sm:$0xff]
    %v953 = vld [vmem:[%s7 + $0x30] sm:$0xff]
    %v954 = vld [vmem:[%s7 + $0x38] sm:$0xff]
    %v955 = vld [vmem:[%s7 + $0x40] sm:$0xff]
    %v956 = vld [vmem:[%s7 + $0x48] sm:$0xff]
    %v957 = vld [vmem:[%s7 + $0x50] sm:$0xff]
    %v958 = vld [vmem:[%s7 + $0x58] sm:$0xff]
    %v959 = vld [vmem:[%s7 + $0x60] sm:$0xff]
    %v960 = vld [vmem:[%s7 + $0x68] sm:$0xff]
    %v961 = vld [vmem:[%s7 + $0x70] sm:$0xff]
    %v962 = vld [vmem:[%s7 + $0x78] sm:$0xff]
    %v963 = vld [vmem:[%s7 + $0x80] sm:$0xff]
    %v964 = vld [vmem:[%s7 + $0x88] sm:$0xff]
    %v965 = vld [vmem:[%s7 + $0x90] sm:$0xff]
    %v966 = vld [vmem:[%s7 + $0x98] sm:$0xff]
    %v967 = vld [vmem:[%s7 + $0xa0] sm:$0xff]
    %v968 = vld [vmem:[%s7 + $0xa8] sm:$0xff]
    %v969 = vld [vmem:[%s7 + $0xb0] sm:$0xff]
    %v970 = vld [vmem:[%s7 + $0xb8] sm:$0xff]
    %v971 = vld [vmem:[%s7 + $0xc0] sm:$0xff]
    %v972 = vld [vmem:[%s7 + $0xc8] sm:$0xff]
    %v973 = vld [vmem:[%s7 + $0xd0] sm:$0xff]
    %v974 = vld [vmem:[%s7 + $0xd8] sm:$0xff]
    %v975 = vld [vmem:[%s7 + $0xe0] sm:$0xff]
    %v976 = vld [vmem:[%s7 + $0xe8] sm:$0xff]
    %v977 = vld [vmem:[%s7 + $0xf0] sm:$0xff]
    %v978 = vld [vmem:[%s7 + $0xf8] sm:$0xff]
    %v979 = vld [vmem:[%s7 + $0x100] sm:$0xff]
    %v980 = vld [vmem:[%s7 + $0x108] sm:$0xff]
    %v981 = vld [vmem:[%s7 + $0x110] sm:$0xff]
    %v982 = vld [vmem:[%s7 + $0x118] sm:$0xff]
    %v983 = vld [vmem:[%s7 + $0x120] sm:$0xff]
    %v984 = vld [vmem:[%s7 + $0x128] sm:$0xff]
    %v985 = vld [vmem:[%s7 + $0x130] sm:$0xff]
    %v986 = vld [vmem:[%s7 + $0x138] sm:$0xff]
    %v987 = vld [vmem:[%s7 + $0x140] sm:$0xff]
    %v988 = vld [vmem:[%s7 + $0x148] sm:$0xff]
    %v989 = vld [vmem:[%s7 + $0x150] sm:$0xff]
    %v990 = vld [vmem:[%s7 + $0x158] sm:$0xff]
    %v991 = vld [vmem:[%s7 + $0x160] sm:$0xff]
    %v992 = vld [vmem:[%s7 + $0x168] sm:$0xff]
    %v993 = vld [vmem:[%s7 + $0x170] sm:$0xff]
    %v994 = vld [vmem:[%s7 + $0x178] sm:$0xff]
    %v995 = vld [vmem:[%s8] sm:$0x1]
    %v997 = vlaneseq
    %v998 = vshrl.u32 %v997, 7
    %v999 = vsub.s32 0, %v998
    %v1000 = vrot.slane %v995, %v999
    %1002 = vmatprep.subr.mxu0 0.0
    %1003 = vmatpush1.msra.mxu0 %v947
    %1004 = vmatprep.subr.mxu0 0.0
    %1005 = vmatpush1.msra.mxu0 %v948
    %1006 = vmatprep.subr.mxu0 0.0
    %1007 = vmatpush1.msra.mxu0 %v949
    %1008 = vmatprep.subr.mxu0 0.0
    %1009 = vmatpush1.msra.mxu0 %v950
    %1010 = vmatprep.subr.mxu0 0.0
    %1011 = vmatpush1.msra.mxu0 %v951
    %1012 = vmatprep.subr.mxu0 0.0
    %1013 = vmatpush1.msra.mxu0 %v952
    %1014 = vmatprep.subr.mxu0 0.0
    %1015 = vmatpush1.msra.mxu0 %v953
    %1016 = vmatprep.subr.mxu0 0.0
    %1017 = vmatpush1.msra.mxu0 %v954
    %1018 = vmatprep.subr.mxu0 0.0
    %1019 = vmatpush1.msra.mxu0 %v955
    %1020 = vmatprep.subr.mxu0 0.0
    %1021 = vmatpush1.msra.mxu0 %v956
    %1022 = vmatprep.subr.mxu0 0.0
    %1023 = vmatpush1.msra.mxu0 %v957
    %1024 = vmatprep.subr.mxu0 0.0
    %1025 = vmatpush1.msra.mxu0 %v958
    %1026 = vmatprep.subr.mxu0 0.0
    %1027 = vmatpush1.msra.mxu0 %v959
    %1028 = vmatprep.subr.mxu0 0.0
    %1029 = vmatpush1.msra.mxu0 %v960
    %1030 = vmatprep.subr.mxu0 0.0
    %1031 = vmatpush1.msra.mxu0 %v961
    %1032 = vmatprep.subr.mxu0 0.0
    %1033 = vmatpush1.msra.mxu0 %v962
    %1034 = vmatprep.subr.mxu0 0.0
    %1035 = vmatpush1.msra.mxu0 %v963
    %1036 = vmatprep.subr.mxu0 0.0
    %1037 = vmatpush1.msra.mxu0 %v964
    %1038 = vmatprep.subr.mxu0 0.0
    %1039 = vmatpush1.msra.mxu0 %v965
    %1040 = vmatprep.subr.mxu0 0.0
    %1041 = vmatpush1.msra.mxu0 %v966
    %1042 = vmatprep.subr.mxu0 0.0
    %1043 = vmatpush1.msra.mxu0 %v967
    %1044 = vmatprep.subr.mxu0 0.0
    %1045 = vmatpush1.msra.mxu0 %v968
    %1046 = vmatprep.subr.mxu0 0.0
    %1047 = vmatpush1.msra.mxu0 %v969
    %1048 = vmatprep.subr.mxu0 0.0
    %1049 = vmatpush1.msra.mxu0 %v970
    %1050 = vmatprep.subr.mxu0 0.0
    %1051 = vmatpush1.msra.mxu0 %v971
    %1052 = vmatprep.subr.mxu0 0.0
    %1053 = vmatpush1.msra.mxu0 %v972
    %1054 = vmatprep.subr.mxu0 0.0
    %1055 = vmatpush1.msra.mxu0 %v973
    %1056 = vmatprep.subr.mxu0 0.0
    %1057 = vmatpush1.msra.mxu0 %v974
    %1058 = vmatprep.subr.mxu0 0.0
    %1059 = vmatpush1.msra.mxu0 %v975
    %1060 = vmatprep.subr.mxu0 0.0
    %1061 = vmatpush1.msra.mxu0 %v976
    %1062 = vmatprep.subr.mxu0 0.0
    %1063 = vmatpush1.msra.mxu0 %v977
    %1064 = vmatprep.subr.mxu0 0.0
    %1065 = vmatpush1.msra.mxu0 %v978
    %1066 = vmatprep.mubr.f32.mxu0 %v919
    %1067 = vmatmul.mubr.f32.gmra.mrb[0].mxu0 %v931
    %v1068 = vpop.f32.mrb[0].mxu0
    %v1069 = vadd.f32 %v1000, %v1068
    %v1070 = vpop.f32.mrb[0].mxu0
    %1071 = vmatprep.mubr.f32.mxu0 %v920
    %1072 = vmatmul.mubr.f32.gmra.mrb[0].mxu0 %v932
    %v1073 = vpop.f32.mrb[0].mxu0
    %v1074 = vadd.f32 %v1000, %v1073
    %v1075 = vpop.f32.mrb[0].mxu0
    %1076 = vmatprep.mubr.f32.mxu0 %v921
    %1077 = vmatmul.mubr.f32.gmra.mrb[0].mxu0 %v933
    %v1078 = vpop.f32.mrb[0].mxu0
    %v1079 = vadd.f32 %v1000, %v1078
    %v1080 = vpop.f32.mrb[0].mxu0
    %1081 = vmatprep.mubr.f32.mxu0 %v922
    %1082 = vmatmul.mubr.f32.gmra.mrb[0].mxu0 %v934
    %v1083 = vpop.f32.mrb[0].mxu0
    %v1084 = vadd.f32 %v1000, %v1083
    %v1085 = vpop.f32.mrb[0].mxu0
    %1086 = vdwg.mxu0
    %1087 = vmatprep.subr.mxu0 0.0
    %1088 = vmatpush1.msra.mxu0 %v979
    %1089 = vmatprep.subr.mxu0 0.0
    %1090 = vmatpush1.msra.mxu0 %v980
    %1091 = vmatprep.subr.mxu0 0.0
    %1092 = vmatpush1.msra.mxu0 %v981
    %1093 = vmatprep.subr.mxu0 0.0
    %1094 = vmatpush1.msra.mxu0 %v982
    %1095 = vmatprep.subr.mxu0 0.0
    %1096 = vmatpush1.msra.mxu0 %v983
    %1097 = vmatprep.subr.mxu0 0.0
    %1098 = vmatpush1.msra.mxu0 %v984
    %1099 = vmatprep.subr.mxu0 0.0
    %1100 = vmatpush1.msra.mxu0 %v985
    %1101 = vmatprep.subr.mxu0 0.0
    %1102 = vmatpush1.msra.mxu0 %v986
    %1103 = vmatprep.subr.mxu0 0.0
    %1104 = vmatpush1.msra.mxu0 %v987
    %1105 = vmatprep.subr.mxu0 0.0
    %1106 = vmatpush1.msra.mxu0 %v988
    %1107 = vmatprep.subr.mxu0 0.0
    %1108 = vmatpush1.msra.mxu0 %v989
    %1109 = vmatprep.subr.mxu0 0.0
    %1110 = vmatpush1.msra.mxu0 %v990
    %1111 = vmatprep.subr.mxu0 0.0
    %1112 = vmatpush1.msra.mxu0 %v991
    %1113 = vmatprep.subr.mxu0 0.0
    %1114 = vmatpush1.msra.mxu0 %v992
    %1115 = vmatprep.subr.mxu0 0.0
    %1116 = vmatpush1.msra.mxu0 %v993
    %1117 = vmatprep.subr.mxu0 0.0
    %1118 = vmatpush1.msra.mxu0 %v994
    %1119 = vmatprep.subr.mxu0 0.0
    %1120 = vmatpush1.msra.mxu0 0.0
    %1121 = vmatprep.subr.mxu0 0.0
    %1122 = vmatpush1.msra.mxu0 0.0
    %1123 = vmatprep.subr.mxu0 0.0
    %1124 = vmatpush1.msra.mxu0 0.0
    %1125 = vmatprep.subr.mxu0 0.0
    %1126 = vmatpush1.msra.mxu0 0.0
    %1127 = vmatprep.subr.mxu0 0.0
    %1128 = vmatpush1.msra.mxu0 0.0
    %1129 = vmatprep.subr.mxu0 0.0
    %1130 = vmatpush1.msra.mxu0 0.0
    %1131 = vmatprep.subr.mxu0 0.0
    %1132 = vmatpush1.msra.mxu0 0.0
    %1133 = vmatprep.subr.mxu0 0.0
    %1134 = vmatpush1.msra.mxu0 0.0
    %1135 = vmatprep.subr.mxu0 0.0
    %1136 = vmatpush1.msra.mxu0 0.0
    %1137 = vmatprep.subr.mxu0 0.0
    %1138 = vmatpush1.msra.mxu0 0.0
    %1139 = vmatprep.subr.mxu0 0.0
    %1140 = vmatpush1.msra.mxu0 0.0
    %1141 = vmatprep.subr.mxu0 0.0
    %1142 = vmatpush1.msra.mxu0 0.0
    %1143 = vmatprep.subr.mxu0 0.0
    %1144 = vmatpush1.msra.mxu0 0.0
    %1145 = vmatprep.subr.mxu0 0.0
    %1146 = vmatpush1.msra.mxu0 0.0
    %1147 = vmatprep.subr.mxu0 0.0
    %1148 = vmatpush1.msra.mxu0 0.0
    %1149 = vmatprep.subr.mxu0 0.0
    %1150 = vmatpush1.msra.mxu0 0.0
    %1151 = vmatprep.mubr.f32.mxu0 0.0
    %1152 = vmatmul.mubr.f32.gmra.mrb[0].mxu0 %v943
    %v1153 = vpop.f32.mrb[0].mxu0
    %v1154 = vadd.f32 %v1069, %v1153
    %v1155 = vpop.f32.mrb[0].mxu0
    %1156 = vmatprep.mubr.f32.mxu0 0.0
    %1157 = vmatmul.mubr.f32.gmra.mrb[0].mxu0 %v944
    %v1158 = vpop.f32.mrb[0].mxu0
    %v1159 = vadd.f32 %v1074, %v1158
    %v1160 = vpop.f32.mrb[0].mxu0
    %1161 = vmatprep.mubr.f32.mxu0 0.0
    %1162 = vmatmul.mubr.f32.gmra.mrb[0].mxu0 %v945
    %v1163 = vpop.f32.mrb[0].mxu0
    %v1164 = vadd.f32 %v1079, %v1163
    %v1165 = vpop.f32.mrb[0].mxu0
    %1166 = vmatprep.mubr.f32.mxu0 0.0
    %1167 = vmatmul.mubr.f32.gmra.mrb[0].mxu0 %v946
    %v1168 = vpop.f32.mrb[0].mxu0
    %v1169 = vadd.f32 %v1084, %v1168
    %v1170 = vpop.f32.mrb[0].mxu0
    %1171 = vdwg.mxu0
    %v1172 = vld [vmem:[%s9] sm:$0xff]
    %v1173 = vld [vmem:[%s9 + $0x8] sm:$0xff]
    %v1174 = vld [vmem:[%s9 + $0x10] sm:$0xff]
    %v1175 = vld [vmem:[%s9 + $0x18] sm:$0xff]
    %v1176 = vld [vmem:[%s9 + $0x20] sm:$0xff]
    %v1177 = vld [vmem:[%s9 + $0x28] sm:$0xff]
    %v1178 = vld [vmem:[%s9 + $0x30] sm:$0xff]
    %v1179 = vld [vmem:[%s9 + $0x38] sm:$0xff]
    %v1180 = vld [vmem:[%s9 + $0x40] sm:$0xff]
    %v1181 = vld [vmem:[%s9 + $0x48] sm:$0xff]
    %v1182 = vld [vmem:[%s9 + $0x50] sm:$0xff]
    %v1183 = vld [vmem:[%s9 + $0x58] sm:$0xff]
    %v1184 = vld [vmem:[%s9 + $0x60] sm:$0xff]
    %v1185 = vld [vmem:[%s9 + $0x68] sm:$0xff]
    %v1186 = vld [vmem:[%s9 + $0x70] sm:$0xff]
    %v1187 = vld [vmem:[%s9 + $0x78] sm:$0xff]
    %1188 = vmatprep.subr.mxu0 0.0
    %1189 = vmatpush1.msra.mxu0 %v1172
    %1190 = vmatprep.subr.mxu0 0.0
    %1191 = vmatpush1.msra.mxu0 %v1173
    %1192 = vmatprep.subr.mxu0 0.0
    %1193 = vmatpush1.msra.mxu0 %v1174
    %1194 = vmatprep.subr.mxu0 0.0
    %1195 = vmatpush1.msra.mxu0 %v1175
    %1196 = vmatprep.subr.mxu0 0.0
    %1197 = vmatpush1.msra.mxu0 %v1176
    %1198 = vmatprep.subr.mxu0 0.0
    %1199 = vmatpush1.msra.mxu0 %v1177
    %1200 = vmatprep.subr.mxu0 0.0
    %1201 = vmatpush1.msra.mxu0 %v1178
    %1202 = vmatprep.subr.mxu0 0.0
    %1203 = vmatpush1.msra.mxu0 %v1179
    %1204 = vmatprep.subr.mxu0 0.0
    %1205 = vmatpush1.msra.mxu0 %v1180
    %1206 = vmatprep.subr.mxu0 0.0
    %1207 = vmatpush1.msra.mxu0 %v1181
    %1208 = vmatprep.subr.mxu0 0.0
    %1209 = vmatpush1.msra.mxu0 %v1182
    %1210 = vmatprep.subr.mxu0 0.0
    %1211 = vmatpush1.msra.mxu0 %v1183
    %1212 = vmatprep.subr.mxu0 0.0
    %1213 = vmatpush1.msra.mxu0 %v1184
    %1214 = vmatprep.subr.mxu0 0.0
    %1215 = vmatpush1.msra.mxu0 %v1185
    %1216 = vmatprep.subr.mxu0 0.0
    %1217 = vmatpush1.msra.mxu0 %v1186
    %1218 = vmatprep.subr.mxu0 0.0
    %1219 = vmatpush1.msra.mxu0 %v1187
    %1220 = vmatprep.subr.mxu0 0.0
    %1221 = vmatpush1.msra.mxu0 0.0
    %1222 = vmatprep.subr.mxu0 0.0
    %1223 = vmatpush1.msra.mxu0 0.0
    %1224 = vmatprep.subr.mxu0 0.0
    %1225 = vmatpush1.msra.mxu0 0.0
    %1226 = vmatprep.subr.mxu0 0.0
    %1227 = vmatpush1.msra.mxu0 0.0
    %1228 = vmatprep.subr.mxu0 0.0
    %1229 = vmatpush1.msra.mxu0 0.0
    %1230 = vmatprep.subr.mxu0 0.0
    %1231 = vmatpush1.msra.mxu0 0.0
    %1232 = vmatprep.subr.mxu0 0.0
    %1233 = vmatpush1.msra.mxu0 0.0
    %1234 = vmatprep.subr.mxu0 0.0
    %1235 = vmatpush1.msra.mxu0 0.0
    %1236 = vmatprep.subr.mxu0 0.0
    %1237 = vmatpush1.msra.mxu0 0.0
    %1238 = vmatprep.subr.mxu0 0.0
    %1239 = vmatpush1.msra.mxu0 0.0
    %1240 = vmatprep.subr.mxu0 0.0
    %1241 = vmatpush1.msra.mxu0 0.0
    %1242 = vmatprep.subr.mxu0 0.0
    %1243 = vmatpush1.msra.mxu0 0.0
    %1244 = vmatprep.subr.mxu0 0.0
    %1245 = vmatpush1.msra.mxu0 0.0
    %1246 = vmatprep.subr.mxu0 0.0
    %1247 = vmatpush1.msra.mxu0 0.0
    %1248 = vmatprep.subr.mxu0 0.0
    %1249 = vmatpush1.msra.mxu0 0.0
    %1250 = vmatprep.subr.mxu0 0.0
    %1251 = vmatpush1.msra.mxu0 0.0
    %1252 = vmatprep.mubr.f32.mxu0 0.0
    %1253 = vmatmul.mubr.f32.gmra.mrb[0].mxu0 %v1154
    %v1254 = vpop.f32.mrb[0].mxu0
    %v1255 = vadd.f32 0.0, %v1254
    %v1256 = vpop.f32.mrb[0].mxu0
    %1257 = vmatprep.mubr.f32.mxu0 0.0
    %1258 = vmatmul.mubr.f32.gmra.mrb[0].mxu0 %v1159
    %v1259 = vpop.f32.mrb[0].mxu0
    %v1260 = vadd.f32 0.0, %v1259
    %v1261 = vpop.f32.mrb[0].mxu0
    %1262 = vmatprep.mubr.f32.mxu0 0.0
    %1263 = vmatmul.mubr.f32.gmra.mrb[0].mxu0 %v1164
    %v1264 = vpop.f32.mrb[0].mxu0
    %v1265 = vadd.f32 0.0, %v1264
    %v1266 = vpop.f32.mrb[0].mxu0
    %1267 = vmatprep.mubr.f32.mxu0 0.0
    %1268 = vmatmul.mubr.f32.gmra.mrb[0].mxu0 %v1169
    %v1269 = vpop.f32.mrb[0].mxu0
    %v1270 = vadd.f32 0.0, %v1269
    %v1271 = vpop.f32.mrb[0].mxu0
    %1272 = vdwg.mxu0
    %vm1273 = vcmask 64512
    %v1274 = vsel %vm1273, %v1255, 0.0
    %v1275 = vsel %vm1273, %v1260, 0.0
    %v1276 = vadd.f32 %v1274, %v1275
    %v1277 = vsel %vm1273, %v1265, 0.0
    %v1278 = vadd.f32 %v1276, %v1277
    %v1279 = vsel %vm1273, %v1270, 0.0
    %v1280 = vadd.f32 %v1278, %v1279
    %v1281 = vrot.slane %v1280, 4
    %v1282 = vadd.f32 %v1280, %v1281
    %v1283 = vrot.slane %v1282, 2
    %v1284 = vadd.f32 %v1282, %v1283
    %v1285 = vrot.slane %v1284, 1
    %v1286 = vadd.f32 %v1284, %v1285
    %v1287 = vmul.f32 %v1154, %v1154
    %v1288 = vmul.f32 %v1159, %v1159
    %v1289 = vmul.f32 %v1164, %v1164
    %v1290 = vmul.f32 %v1169, %v1169
    %1291 = vmatprep.subr.mxu0 0.0
    %1292 = vmatpush1.msra.mxu0 %v1172
    %1293 = vmatprep.subr.mxu0 0.0
    %1294 = vmatpush1.msra.mxu0 %v1173
    %1295 = vmatprep.subr.mxu0 0.0
    %1296 = vmatpush1.msra.mxu0 %v1174
    %1297 = vmatprep.subr.mxu0 0.0
    %1298 = vmatpush1.msra.mxu0 %v1175
    %1299 = vmatprep.subr.mxu0 0.0
    %1300 = vmatpush1.msra.mxu0 %v1176
    %1301 = vmatprep.subr.mxu0 0.0
    %1302 = vmatpush1.msra.mxu0 %v1177
    %1303 = vmatprep.subr.mxu0 0.0
    %1304 = vmatpush1.msra.mxu0 %v1178
    %1305 = vmatprep.subr.mxu0 0.0
    %1306 = vmatpush1.msra.mxu0 %v1179
    %1307 = vmatprep.subr.mxu0 0.0
    %1308 = vmatpush1.msra.mxu0 %v1180
    %1309 = vmatprep.subr.mxu0 0.0
    %1310 = vmatpush1.msra.mxu0 %v1181
    %1311 = vmatprep.subr.mxu0 0.0
    %1312 = vmatpush1.msra.mxu0 %v1182
    %1313 = vmatprep.subr.mxu0 0.0
    %1314 = vmatpush1.msra.mxu0 %v1183
    %1315 = vmatprep.subr.mxu0 0.0
    %1316 = vmatpush1.msra.mxu0 %v1184
    %1317 = vmatprep.subr.mxu0 0.0
    %1318 = vmatpush1.msra.mxu0 %v1185
    %1319 = vmatprep.subr.mxu0 0.0
    %1320 = vmatpush1.msra.mxu0 %v1186
    %1321 = vmatprep.subr.mxu0 0.0
    %1322 = vmatpush1.msra.mxu0 %v1187
    %1323 = vmatprep.subr.mxu0 0.0
    %1324 = vmatpush1.msra.mxu0 0.0
    %1325 = vmatprep.subr.mxu0 0.0
    %1326 = vmatpush1.msra.mxu0 0.0
    %1327 = vmatprep.subr.mxu0 0.0
    %1328 = vmatpush1.msra.mxu0 0.0
    %1329 = vmatprep.subr.mxu0 0.0
    %1330 = vmatpush1.msra.mxu0 0.0
    %1331 = vmatprep.subr.mxu0 0.0
    %1332 = vmatpush1.msra.mxu0 0.0
    %1333 = vmatprep.subr.mxu0 0.0
    %1334 = vmatpush1.msra.mxu0 0.0
    %1335 = vmatprep.subr.mxu0 0.0
    %1336 = vmatpush1.msra.mxu0 0.0
    %1337 = vmatprep.subr.mxu0 0.0
    %1338 = vmatpush1.msra.mxu0 0.0
    %1339 = vmatprep.subr.mxu0 0.0
    %1340 = vmatpush1.msra.mxu0 0.0
    %1341 = vmatprep.subr.mxu0 0.0
    %1342 = vmatpush1.msra.mxu0 0.0
    %1343 = vmatprep.subr.mxu0 0.0
    %1344 = vmatpush1.msra.mxu0 0.0
    %1345 = vmatprep.subr.mxu0 0.0
    %1346 = vmatpush1.msra.mxu0 0.0
    %1347 = vmatprep.subr.mxu0 0.0
    %1348 = vmatpush1.msra.mxu0 0.0
    %1349 = vmatprep.subr.mxu0 0.0
    %1350 = vmatpush1.msra.mxu0 0.0
    %1351 = vmatprep.subr.mxu0 0.0
    %1352 = vmatpush1.msra.mxu0 0.0
    %1353 = vmatprep.subr.mxu0 0.0
    %1354 = vmatpush1.msra.mxu0 0.0
    %1355 = vmatprep.mubr.f32.mxu0 0.0
    %1356 = vmatmul.mubr.f32.gmra.mrb[0].mxu0 %v1287
    %v1357 = vpop.f32.mrb[0].mxu0
    %v1358 = vadd.f32 0.0, %v1357
    %v1359 = vpop.f32.mrb[0].mxu0
    %1360 = vmatprep.mubr.f32.mxu0 0.0
    %1361 = vmatmul.mubr.f32.gmra.mrb[0].mxu0 %v1288
    %v1362 = vpop.f32.mrb[0].mxu0
    %v1363 = vadd.f32 0.0, %v1362
    %v1364 = vpop.f32.mrb[0].mxu0
    %1365 = vmatprep.mubr.f32.mxu0 0.0
    %1366 = vmatmul.mubr.f32.gmra.mrb[0].mxu0 %v1289
    %v1367 = vpop.f32.mrb[0].mxu0
    %v1368 = vadd.f32 0.0, %v1367
    %v1369 = vpop.f32.mrb[0].mxu0
    %1370 = vmatprep.mubr.f32.mxu0 0.0
    %1371 = vmatmul.mubr.f32.gmra.mrb[0].mxu0 %v1290
    %v1372 = vpop.f32.mrb[0].mxu0
    %v1373 = vadd.f32 0.0, %v1372
    %v1374 = vpop.f32.mrb[0].mxu0
    %1375 = vdwg.mxu0
    %v1376 = vsel %vm1273, %v1358, 0.0
    %v1377 = vsel %vm1273, %v1363, 0.0
    %v1378 = vadd.f32 %v1376, %v1377
    %v1379 = vsel %vm1273, %v1368, 0.0
    %v1380 = vadd.f32 %v1378, %v1379
    %v1381 = vsel %vm1273, %v1373, 0.0
    %v1382 = vadd.f32 %v1380, %v1381
    %v1383 = vrot.slane %v1382, 4
    %v1384 = vadd.f32 %v1382, %v1383
    %v1385 = vrot.slane %v1384, 2
    %v1386 = vadd.f32 %v1384, %v1385
    %v1387 = vrot.slane %v1386, 1
    %v1388 = vadd.f32 %v1386, %v1387
    %v1389 = vmul.f32 %v1286, 0.001953125
    %v1390 = vmul.f32 %v1388, 0.001953125
    %v1391 = vmul.f32 %v1389, %v1389
    %v1392 = vsub.f32 %v1390, %v1391
    %v1393 = vmax.f32 %v1392, 0.0
    %v1394 = vld [vmem:[%s11] sm:$0x1]
    %v1395 = vadd.f32 %v1393, 1e-05
    %v1396 = vrsqrt.pop %v1395
    %v1397 = vmul.f32 %v1394, %v1396
    %v1398 = vld [vmem:[%s12] sm:$0x1]
    %v1399 = vmul.f32 %v1389, %v1397
    %v1400 = vsub.f32 %v1398, %v1399
    %v1401 = vld [vmem:[%s10] sm:$0xff]
    %v1403 = vsel %vm1273, %v1397, 0
    %1405 = vmatprep.subr.mxu0 0.0
    %1406 = vmatpush1.msra.mxu0 %v1401
    %1407 = vmatprep.subr.mxu0 0.0
    %1408 = vmatpush1.msra.mxu0 0.0
    %1409 = vmatprep.subr.mxu0 0.0
    %1410 = vmatpush1.msra.mxu0 0.0
    %1411 = vmatprep.subr.mxu0 0.0
    %1412 = vmatpush1.msra.mxu0 0.0
    %1413 = vmatprep.subr.mxu0 0.0
    %1414 = vmatpush1.msra.mxu0 0.0
    %1415 = vmatprep.subr.mxu0 0.0
    %1416 = vmatpush1.msra.mxu0 0.0
    %1417 = vmatprep.subr.mxu0 0.0
    %1418 = vmatpush1.msra.mxu0 0.0
    %1419 = vmatprep.subr.mxu0 0.0
    %1420 = vmatpush1.msra.mxu0 0.0
    %1421 = vmatprep.subr.mxu0 0.0
    %1422 = vmatpush1.msra.mxu0 0.0
    %1423 = vmatprep.subr.mxu0 0.0
    %1424 = vmatpush1.msra.mxu0 0.0
    %1425 = vmatprep.subr.mxu0 0.0
    %1426 = vmatpush1.msra.mxu0 0.0
    %1427 = vmatprep.subr.mxu0 0.0
    %1428 = vmatpush1.msra.mxu0 0.0
    %1429 = vmatprep.subr.mxu0 0.0
    %1430 = vmatpush1.msra.mxu0 0.0
    %1431 = vmatprep.subr.mxu0 0.0
    %1432 = vmatpush1.msra.mxu0 0.0
    %1433 = vmatprep.subr.mxu0 0.0
    %1434 = vmatpush1.msra.mxu0 0.0
    %1435 = vmatprep.subr.mxu0 0.0
    %1436 = vmatpush1.msra.mxu0 0.0
    %1437 = vmatprep.subr.mxu0 0.0
    %1438 = vmatpush1.msra.mxu0 0.0
    %1439 = vmatprep.subr.mxu0 0.0
    %1440 = vmatpush1.msra.mxu0 0.0
    %1441 = vmatprep.subr.mxu0 0.0
    %1442 = vmatpush1.msra.mxu0 0.0
    %1443 = vmatprep.subr.mxu0 0.0
    %1444 = vmatpush1.msra.mxu0 0.0
    %1445 = vmatprep.subr.mxu0 0.0
    %1446 = vmatpush1.msra.mxu0 0.0
    %1447 = vmatprep.subr.mxu0 0.0
    %1448 = vmatpush1.msra.mxu0 0.0
    %1449 = vmatprep.subr.mxu0 0.0
    %1450 = vmatpush1.msra.mxu0 0.0
    %1451 = vmatprep.subr.mxu0 0.0
    %1452 = vmatpush1.msra.mxu0 0.0
    %1453 = vmatprep.subr.mxu0 0.0
    %1454 = vmatpush1.msra.mxu0 0.0
    %1455 = vmatprep.subr.mxu0 0.0
    %1456 = vmatpush1.msra.mxu0 0.0
    %1457 = vmatprep.subr.mxu0 0.0
    %1458 = vmatpush1.msra.mxu0 0.0
    %1459 = vmatprep.subr.mxu0 0.0
    %1460 = vmatpush1.msra.mxu0 0.0
    %1461 = vmatprep.subr.mxu0 0.0
    %1462 = vmatpush1.msra.mxu0 0.0
    %1463 = vmatprep.subr.mxu0 0.0
    %1464 = vmatpush1.msra.mxu0 0.0
    %1465 = vmatprep.subr.mxu0 0.0
    %1466 = vmatpush1.msra.mxu0 0.0
    %1467 = vmatprep.subr.mxu0 0.0
    %1468 = vmatpush1.msra.mxu0 0.0
    %1469 = vmatprep.mubr.f32.mxu0 0.0
    %1470 = vmatmul.mubr.f32.gmra.mrb[0].mxu0 %v1403
    %v1471 = vpop.f32.mrb[0].mxu0
    %v1472 = vadd.f32 0.0, %v1471
    %v1473 = vpop.f32.mrb[0].mxu0
    %1474 = vdwg.mxu0
    %v1476 = vsel %vm1273, %v1400, 0
    %1478 = vmatprep.subr.mxu0 0.0
    %1479 = vmatpush1.msra.mxu0 %v1401
    %1480 = vmatprep.subr.mxu0 0.0
    %1481 = vmatpush1.msra.mxu0 0.0
    %1482 = vmatprep.subr.mxu0 0.0
    %1483 = vmatpush1.msra.mxu0 0.0
    %1484 = vmatprep.subr.mxu0 0.0
    %1485 = vmatpush1.msra.mxu0 0.0
    %1486 = vmatprep.subr.mxu0 0.0
    %1487 = vmatpush1.msra.mxu0 0.0
    %1488 = vmatprep.subr.mxu0 0.0
    %1489 = vmatpush1.msra.mxu0 0.0
    %1490 = vmatprep.subr.mxu0 0.0
    %1491 = vmatpush1.msra.mxu0 0.0
    %1492 = vmatprep.subr.mxu0 0.0
    %1493 = vmatpush1.msra.mxu0 0.0
    %1494 = vmatprep.subr.mxu0 0.0
    %1495 = vmatpush1.msra.mxu0 0.0
    %1496 = vmatprep.subr.mxu0 0.0
    %1497 = vmatpush1.msra.mxu0 0.0
    %1498 = vmatprep.subr.mxu0 0.0
    %1499 = vmatpush1.msra.mxu0 0.0
    %1500 = vmatprep.subr.mxu0 0.0
    %1501 = vmatpush1.msra.mxu0 0.0
    %1502 = vmatprep.subr.mxu0 0.0
    %1503 = vmatpush1.msra.mxu0 0.0
    %1504 = vmatprep.subr.mxu0 0.0
    %1505 = vmatpush1.msra.mxu0 0.0
    %1506 = vmatprep.subr.mxu0 0.0
    %1507 = vmatpush1.msra.mxu0 0.0
    %1508 = vmatprep.subr.mxu0 0.0
    %1509 = vmatpush1.msra.mxu0 0.0
    %1510 = vmatprep.subr.mxu0 0.0
    %1511 = vmatpush1.msra.mxu0 0.0
    %1512 = vmatprep.subr.mxu0 0.0
    %1513 = vmatpush1.msra.mxu0 0.0
    %1514 = vmatprep.subr.mxu0 0.0
    %1515 = vmatpush1.msra.mxu0 0.0
    %1516 = vmatprep.subr.mxu0 0.0
    %1517 = vmatpush1.msra.mxu0 0.0
    %1518 = vmatprep.subr.mxu0 0.0
    %1519 = vmatpush1.msra.mxu0 0.0
    %1520 = vmatprep.subr.mxu0 0.0
    %1521 = vmatpush1.msra.mxu0 0.0
    %1522 = vmatprep.subr.mxu0 0.0
    %1523 = vmatpush1.msra.mxu0 0.0
    %1524 = vmatprep.subr.mxu0 0.0
    %1525 = vmatpush1.msra.mxu0 0.0
    %1526 = vmatprep.subr.mxu0 0.0
    %1527 = vmatpush1.msra.mxu0 0.0
    %1528 = vmatprep.subr.mxu0 0.0
    %1529 = vmatpush1.msra.mxu0 0.0
    %1530 = vmatprep.subr.mxu0 0.0
    %1531 = vmatpush1.msra.mxu0 0.0
    %1532 = vmatprep.subr.mxu0 0.0
    %1533 = vmatpush1.msra.mxu0 0.0
    %1534 = vmatprep.subr.mxu0 0.0
    %1535 = vmatpush1.msra.mxu0 0.0
    %1536 = vmatprep.subr.mxu0 0.0
    %1537 = vmatpush1.msra.mxu0 0.0
    %1538 = vmatprep.subr.mxu0 0.0
    %1539 = vmatpush1.msra.mxu0 0.0
    %1540 = vmatprep.subr.mxu0 0.0
    %1541 = vmatpush1.msra.mxu0 0.0
    %1542 = vmatprep.mubr.f32.mxu0 0.0
    %1543 = vmatmul.mubr.f32.gmra.mrb[0].mxu0 %v1476
    %v1544 = vpop.f32.mrb[0].mxu0
    %v1545 = vadd.f32 0.0, %v1544
    %v1546 = vpop.f32.mrb[0].mxu0
    %1547 = vdwg.mxu0
    %v1548 = vlaneseq
    %v1549 = vshrl.u32 %v1548, 7
    %v1550 = vsub.s32 0, %v1549
    %v1551 = vrot.slane %v1472, %v1550
    %v1552 = vmul.f32 %v1154, %v1551
    %v1553 = vmul.f32 %v1159, %v1551
    %v1554 = vmul.f32 %v1164, %v1551
    %v1555 = vmul.f32 %v1169, %v1551
    %v1556 = vlaneseq
    %v1557 = vshrl.u32 %v1556, 7
    %v1558 = vsub.s32 0, %v1557
    %v1559 = vrot.slane %v1545, %v1558
    %v1560 = vadd.f32 %v1552, %v1559
    %v1561 = vadd.f32 %v1553, %v1559
    %v1562 = vadd.f32 %v1554, %v1559
    %v1563 = vadd.f32 %v1555, %v1559
    %v1564 = vadd.f32 %v1560, %v904
    %v1565 = vadd.f32 %v1561, %v906
    %v1566 = vadd.f32 %v1562, %v908
    %v1567 = vadd.f32 %v1563, %v910
    %vm1568 = vcmp.ge.f32.partialorder %v1564, 0.0
    %vm1569 = vcmp.ge.f32.partialorder %v1565, 0.0
    %vm1570 = vcmp.ge.f32.partialorder %v1566, 0.0
    %vm1571 = vcmp.ge.f32.partialorder %v1567, 0.0
    %v1572 = vmul.f32 %v1564, 0.01
    %v1573 = vmul.f32 %v1565, 0.01
    %v1574 = vmul.f32 %v1566, 0.01
    %v1575 = vmul.f32 %v1567, 0.01
    %v1576 = vsel %vm1568, %v1564, %v1572
    %v1577 = vsel %vm1569, %v1565, %v1573
    %v1578 = vsel %vm1570, %v1566, %v1574
    %v1579 = vsel %vm1571, %v1567, %v1575
    %v1580 = vlaneseq
    %v1581 = vand.u32 %v1580, 127
    %vm1582 = vcmp.ge.s32.totalorder %v1581, 8
    %1583 = vrot.lane.b32.xlu0 %v1576, 8
    %v1584 = vpop.permute.xlu0 %1583
    %1585 = vrot.lane.b32.xlu0 %v1577, 8
    %v1586 = vpop.permute.xlu0 %1585
    %1587 = vrot.lane.b32.xlu0 %v1578, 8
    %v1588 = vpop.permute.xlu0 %1587
    %1589 = vrot.lane.b32.xlu0 %v1579, 8
    %v1590 = vpop.permute.xlu0 %1589
    %v1591 = vsel %vm1582, %v1584, -inf
    %v1592 = vsel %vm1582, %v1586, -inf
    %v1593 = vsel %vm1582, %v1588, -inf
    %v1594 = vsel %vm1582, %v1590, -inf
    %vm1595 = vcmp.lt.s32.totalorder %v1581, 120
    %1596 = vrot.lane.b32.xlu0 %v1576, 120
    %v1597 = vpop.permute.xlu0 %1596
    %1598 = vrot.lane.b32.xlu0 %v1577, 120
    %v1599 = vpop.permute.xlu0 %1598
    %1600 = vrot.lane.b32.xlu0 %v1578, 120
    %v1601 = vpop.permute.xlu0 %1600
    %1602 = vrot.lane.b32.xlu0 %v1579, 120
    %v1603 = vpop.permute.xlu0 %1602
    %v1604 = vsel %vm1595, %v1597, -inf
    %v1605 = vsel %vm1595, %v1599, -inf
    %v1606 = vsel %vm1595, %v1601, -inf
    %v1607 = vsel %vm1595, %v1603, -inf
    %v1608 = vmax.f32 %v1576, %v1591
    %v1609 = vmax.f32 %v1577, %v1592
    %v1610 = vmax.f32 %v1578, %v1593
    %v1611 = vmax.f32 %v1579, %v1594
    %v1612 = vmax.f32 %v1608, %v1604
    %v1613 = vmax.f32 %v1609, %v1605
    %v1614 = vmax.f32 %v1610, %v1606
    %v1615 = vmax.f32 %v1611, %v1607
    %vm1616 = vcmp.ge.s32.totalorder %v130, 1
    %vm1617 = vcmp.ge.s32.totalorder %v131, 1
    %vm1618 = vcmp.ge.s32.totalorder %v132, 1
    %vm1619 = vcmp.ge.s32.totalorder %v133, 1
    %v1620 = vrot.slane %v1612, 7
    %v1621 = vrot.slane %v1613, 7
    %v1622 = vrot.slane %v1614, 7
    %v1623 = vrot.slane %v1615, 7
    %v1624 = vsel %vm138, %v1622, %v1623
    %v1625 = vsel %vm138, %v1621, %v1622
    %v1626 = vsel %vm138, %v1620, %v1621
    %v1627 = vsel %vm138, %v1623, %v1620
    %v1628 = vsel %vm1616, %v1627, -inf
    %v1629 = vsel %vm1617, %v1626, -inf
    %v1630 = vsel %vm1618, %v1625, -inf
    %v1631 = vsel %vm1619, %v1624, -inf
    %vm1632 = vcmp.le.s32.totalorder %v130, 14
    %vm1633 = vcmp.le.s32.totalorder %v131, 14
    %vm1634 = vcmp.le.s32.totalorder %v132, 14
    %vm1635 = vcmp.le.s32.totalorder %v133, 14
    %v1636 = vrot.slane %v1612, 1
    %v1637 = vrot.slane %v1613, 1
    %v1638 = vrot.slane %v1614, 1
    %v1639 = vrot.slane %v1615, 1
    %v1640 = vsel %vm167, %v1638, %v1639
    %v1641 = vsel %vm167, %v1637, %v1638
    %v1642 = vsel %vm167, %v1636, %v1637
    %v1643 = vsel %vm167, %v1639, %v1636
    %v1644 = vsel %vm1632, %v1642, -inf
    %v1645 = vsel %vm1633, %v1641, -inf
    %v1646 = vsel %vm1634, %v1640, -inf
    %v1647 = vsel %vm1635, %v1643, -inf
    %v1648 = vmax.f32 %v1612, %v1628
    %v1649 = vmax.f32 %v1613, %v1629
    %v1650 = vmax.f32 %v1614, %v1630
    %v1651 = vmax.f32 %v1615, %v1631
    %v1652 = vmax.f32 %v1648, %v1644
    %v1653 = vmax.f32 %v1649, %v1645
    %v1654 = vmax.f32 %v1650, %v1646
    %v1655 = vmax.f32 %v1651, %v1647
    %v1656 = vld [vmem:[%s15] sm:$0xff]
    %vm1657 = vcmask 261120
    %v1659 = vsel %vm1657, %v1656, 0
    %1661 = vmatprep.subr.mxu0 0.0
    %1662 = vmatpush1.msra.mxu0 %v1652
    %1663 = vmatprep.subr.mxu0 0.0
    %1664 = vmatpush1.msra.mxu0 %v1653
    %1665 = vmatprep.subr.mxu0 0.0
    %1666 = vmatpush1.msra.mxu0 %v1654
    %1667 = vmatprep.subr.mxu0 0.0
    %1668 = vmatpush1.msra.mxu0 %v1655
    %1669 = vmatprep.subr.mxu0 0.0
    %1670 = vmatpush1.msra.mxu0 0.0
    %1671 = vmatprep.subr.mxu0 0.0
    %1672 = vmatpush1.msra.mxu0 0.0
    %1673 = vmatprep.subr.mxu0 0.0
    %1674 = vmatpush1.msra.mxu0 0.0
    %1675 = vmatprep.subr.mxu0 0.0
    %1676 = vmatpush1.msra.mxu0 0.0
    %1677 = vmatprep.subr.mxu0 0.0
    %1678 = vmatpush1.msra.mxu0 0.0
    %1679 = vmatprep.subr.mxu0 0.0
    %1680 = vmatpush1.msra.mxu0 0.0
    %1681 = vmatprep.subr.mxu0 0.0
    %1682 = vmatpush1.msra.mxu0 0.0
    %1683 = vmatprep.subr.mxu0 0.0
    %1684 = vmatpush1.msra.mxu0 0.0
    %1685 = vmatprep.subr.mxu0 0.0
    %1686 = vmatpush1.msra.mxu0 0.0
    %1687 = vmatprep.subr.mxu0 0.0
    %1688 = vmatpush1.msra.mxu0 0.0
    %1689 = vmatprep.subr.mxu0 0.0
    %1690 = vmatpush1.msra.mxu0 0.0
    %1691 = vmatprep.subr.mxu0 0.0
    %1692 = vmatpush1.msra.mxu0 0.0
    %1693 = vmatprep.subr.mxu0 0.0
    %1694 = vmatpush1.msra.mxu0 0.0
    %1695 = vmatprep.subr.mxu0 0.0
    %1696 = vmatpush1.msra.mxu0 0.0
    %1697 = vmatprep.subr.mxu0 0.0
    %1698 = vmatpush1.msra.mxu0 0.0
    %1699 = vmatprep.subr.mxu0 0.0
    %1700 = vmatpush1.msra.mxu0 0.0
    %1701 = vmatprep.subr.mxu0 0.0
    %1702 = vmatpush1.msra.mxu0 0.0
    %1703 = vmatprep.subr.mxu0 0.0
    %1704 = vmatpush1.msra.mxu0 0.0
    %1705 = vmatprep.subr.mxu0 0.0
    %1706 = vmatpush1.msra.mxu0 0.0
    %1707 = vmatprep.subr.mxu0 0.0
    %1708 = vmatpush1.msra.mxu0 0.0
    %1709 = vmatprep.subr.mxu0 0.0
    %1710 = vmatpush1.msra.mxu0 0.0
    %1711 = vmatprep.subr.mxu0 0.0
    %1712 = vmatpush1.msra.mxu0 0.0
    %1713 = vmatprep.subr.mxu0 0.0
    %1714 = vmatpush1.msra.mxu0 0.0
    %1715 = vmatprep.subr.mxu0 0.0
    %1716 = vmatpush1.msra.mxu0 0.0
    %1717 = vmatprep.subr.mxu0 0.0
    %1718 = vmatpush1.msra.mxu0 0.0
    %1719 = vmatprep.subr.mxu0 0.0
    %1720 = vmatpush1.msra.mxu0 0.0
    %1721 = vmatprep.subr.mxu0 0.0
    %1722 = vmatpush1.msra.mxu0 0.0
    %1723 = vmatprep.subr.mxu0 0.0
    %1724 = vmatpush1.msra.mxu0 0.0
    %1725 = vmatprep.mubr.f32.mxu0 0.0
    %1726 = vmatmul.mubr.f32.gmra.mrb[0].mxu0 %v1659
    %v1727 = vpop.f32.mrb[0].mxu0
    %v1728 = vadd.f32 0.0, %v1727
    %v1729 = vpop.f32.mrb[0].mxu0
    %1730 = vdwg.mxu0
    %v1731 = vld [vmem:[%s16] sm:$0xff]
    %v1733 = vsel %vm1657, %v1731, 0
    %1735 = vmatprep.subr.mxu0 0.0
    %1736 = vmatpush1.msra.mxu0 %v1652
    %1737 = vmatprep.subr.mxu0 0.0
    %1738 = vmatpush1.msra.mxu0 %v1653
    %1739 = vmatprep.subr.mxu0 0.0
    %1740 = vmatpush1.msra.mxu0 %v1654
    %1741 = vmatprep.subr.mxu0 0.0
    %1742 = vmatpush1.msra.mxu0 %v1655
    %1743 = vmatprep.subr.mxu0 0.0
    %1744 = vmatpush1.msra.mxu0 0.0
    %1745 = vmatprep.subr.mxu0 0.0
    %1746 = vmatpush1.msra.mxu0 0.0
    %1747 = vmatprep.subr.mxu0 0.0
    %1748 = vmatpush1.msra.mxu0 0.0
    %1749 = vmatprep.subr.mxu0 0.0
    %1750 = vmatpush1.msra.mxu0 0.0
    %1751 = vmatprep.subr.mxu0 0.0
    %1752 = vmatpush1.msra.mxu0 0.0
    %1753 = vmatprep.subr.mxu0 0.0
    %1754 = vmatpush1.msra.mxu0 0.0
    %1755 = vmatprep.subr.mxu0 0.0
    %1756 = vmatpush1.msra.mxu0 0.0
    %1757 = vmatprep.subr.mxu0 0.0
    %1758 = vmatpush1.msra.mxu0 0.0
    %1759 = vmatprep.subr.mxu0 0.0
    %1760 = vmatpush1.msra.mxu0 0.0
    %1761 = vmatprep.subr.mxu0 0.0
    %1762 = vmatpush1.msra.mxu0 0.0
    %1763 = vmatprep.subr.mxu0 0.0
    %1764 = vmatpush1.msra.mxu0 0.0
    %1765 = vmatprep.subr.mxu0 0.0
    %1766 = vmatpush1.msra.mxu0 0.0
    %1767 = vmatprep.subr.mxu0 0.0
    %1768 = vmatpush1.msra.mxu0 0.0
    %1769 = vmatprep.subr.mxu0 0.0
    %1770 = vmatpush1.msra.mxu0 0.0
    %1771 = vmatprep.subr.mxu0 0.0
    %1772 = vmatpush1.msra.mxu0 0.0
    %1773 = vmatprep.subr.mxu0 0.0
    %1774 = vmatpush1.msra.mxu0 0.0
    %1775 = vmatprep.subr.mxu0 0.0
    %1776 = vmatpush1.msra.mxu0 0.0
    %1777 = vmatprep.subr.mxu0 0.0
    %1778 = vmatpush1.msra.mxu0 0.0
    %1779 = vmatprep.subr.mxu0 0.0
    %1780 = vmatpush1.msra.mxu0 0.0
    %1781 = vmatprep.subr.mxu0 0.0
    %1782 = vmatpush1.msra.mxu0 0.0
    %1783 = vmatprep.subr.mxu0 0.0
    %1784 = vmatpush1.msra.mxu0 0.0
    %1785 = vmatprep.subr.mxu0 0.0
    %1786 = vmatpush1.msra.mxu0 0.0
    %1787 = vmatprep.subr.mxu0 0.0
    %1788 = vmatpush1.msra.mxu0 0.0
    %1789 = vmatprep.subr.mxu0 0.0
    %1790 = vmatpush1.msra.mxu0 0.0
    %1791 = vmatprep.subr.mxu0 0.0
    %1792 = vmatpush1.msra.mxu0 0.0
    %1793 = vmatprep.subr.mxu0 0.0
    %1794 = vmatpush1.msra.mxu0 0.0
    %1795 = vmatprep.subr.mxu0 0.0
    %1796 = vmatpush1.msra.mxu0 0.0
    %1797 = vmatprep.subr.mxu0 0.0
    %1798 = vmatpush1.msra.mxu0 0.0
    %1799 = vmatprep.mubr.f32.mxu0 0.0
    %1800 = vmatmul.mubr.f32.gmra.mrb[0].mxu0 %v1733
    %v1801 = vpop.f32.mrb[0].mxu0
    %v1802 = vadd.f32 0.0, %v1801
    %v1803 = vpop.f32.mrb[0].mxu0
    %1804 = vdwg.mxu0
    %v1805 = vld [vmem:[#allocation8] sm:$0xff]
    %v1806 = vld [vmem:[#allocation8 + $0x8] sm:$0xff]
    %v1807 = vld [vmem:[#allocation8 + $0x10] sm:$0xff]
    %v1808 = vld [vmem:[#allocation8 + $0x18] sm:$0xff]
    %v1809 = vld [vmem:[#allocation8 + $0x20] sm:$0xff]
    %v1810 = vld [vmem:[#allocation8 + $0x28] sm:$0xff]
    %v1811 = vld [vmem:[#allocation8 + $0x30] sm:$0xff]
    %v1812 = vld [vmem:[#allocation8 + $0x38] sm:$0xff]
    %v1813 = vld [vmem:[#allocation8 + $0x40] sm:$0xff]
    %v1814 = vld [vmem:[#allocation8 + $0x48] sm:$0xff]
    %v1815 = vld [vmem:[#allocation8 + $0x50] sm:$0xff]
    %v1816 = vld [vmem:[#allocation8 + $0x58] sm:$0xff]
    %v1817 = vld [vmem:[#allocation8 + $0x60] sm:$0xff]
    %v1818 = vld [vmem:[#allocation8 + $0x68] sm:$0xff]
    %v1819 = vld [vmem:[#allocation8 + $0x70] sm:$0xff]
    %v1820 = vld [vmem:[#allocation8 + $0x78] sm:$0xff]
    %v1821 = vld [vmem:[#allocation10] sm:$0xff]
    %v1822 = vld [vmem:[#allocation10 + $0x8] sm:$0xff]
    %v1823 = vld [vmem:[#allocation10 + $0x10] sm:$0xff]
    %v1824 = vld [vmem:[#allocation10 + $0x18] sm:$0xff]
    %v1825 = vld [vmem:[#allocation10 + $0x20] sm:$0xff]
    %v1826 = vld [vmem:[#allocation10 + $0x28] sm:$0xff]
    %v1827 = vld [vmem:[#allocation10 + $0x30] sm:$0xff]
    %v1828 = vld [vmem:[#allocation10 + $0x38] sm:$0xff]
    %v1829 = vld [vmem:[#allocation10 + $0x40] sm:$0xff]
    %v1830 = vld [vmem:[#allocation10 + $0x48] sm:$0xff]
    %v1831 = vld [vmem:[#allocation10 + $0x50] sm:$0xff]
    %v1832 = vld [vmem:[#allocation10 + $0x58] sm:$0xff]
    %v1833 = vld [vmem:[#allocation10 + $0x60] sm:$0xff]
    %v1834 = vld [vmem:[#allocation10 + $0x68] sm:$0xff]
    %v1835 = vld [vmem:[#allocation10 + $0x70] sm:$0xff]
    %v1836 = vld [vmem:[#allocation10 + $0x78] sm:$0xff]
    %1837 = vmatprep.subr.mxu0 0.0
    %1838 = vmatpush1.msra.mxu0 %v1821
    %1839 = vmatprep.subr.mxu0 0.0
    %1840 = vmatpush1.msra.mxu0 %v1822
    %1841 = vmatprep.subr.mxu0 0.0
    %1842 = vmatpush1.msra.mxu0 %v1823
    %1843 = vmatprep.subr.mxu0 0.0
    %1844 = vmatpush1.msra.mxu0 %v1824
    %1845 = vmatprep.subr.mxu0 0.0
    %1846 = vmatpush1.msra.mxu0 %v1825
    %1847 = vmatprep.subr.mxu0 0.0
    %1848 = vmatpush1.msra.mxu0 %v1826
    %1849 = vmatprep.subr.mxu0 0.0
    %1850 = vmatpush1.msra.mxu0 %v1827
    %1851 = vmatprep.subr.mxu0 0.0
    %1852 = vmatpush1.msra.mxu0 %v1828
    %1853 = vmatprep.subr.mxu0 0.0
    %1854 = vmatpush1.msra.mxu0 %v1829
    %1855 = vmatprep.subr.mxu0 0.0
    %1856 = vmatpush1.msra.mxu0 %v1830
    %1857 = vmatprep.subr.mxu0 0.0
    %1858 = vmatpush1.msra.mxu0 %v1831
    %1859 = vmatprep.subr.mxu0 0.0
    %1860 = vmatpush1.msra.mxu0 %v1832
    %1861 = vmatprep.subr.mxu0 0.0
    %1862 = vmatpush1.msra.mxu0 %v1833
    %1863 = vmatprep.subr.mxu0 0.0
    %1864 = vmatpush1.msra.mxu0 %v1834
    %1865 = vmatprep.subr.mxu0 0.0
    %1866 = vmatpush1.msra.mxu0 %v1835
    %1867 = vmatprep.subr.mxu0 0.0
    %1868 = vmatpush1.msra.mxu0 %v1836
    %1869 = vmatprep.subr.mxu0 0.0
    %1870 = vmatpush1.msra.mxu0 0.0
    %1871 = vmatprep.subr.mxu0 0.0
    %1872 = vmatpush1.msra.mxu0 0.0
    %1873 = vmatprep.subr.mxu0 0.0
    %1874 = vmatpush1.msra.mxu0 0.0
    %1875 = vmatprep.subr.mxu0 0.0
    %1876 = vmatpush1.msra.mxu0 0.0
    %1877 = vmatprep.subr.mxu0 0.0
    %1878 = vmatpush1.msra.mxu0 0.0
    %1879 = vmatprep.subr.mxu0 0.0
    %1880 = vmatpush1.msra.mxu0 0.0
    %1881 = vmatprep.subr.mxu0 0.0
    %1882 = vmatpush1.msra.mxu0 0.0
    %1883 = vmatprep.subr.mxu0 0.0
    %1884 = vmatpush1.msra.mxu0 0.0
    %1885 = vmatprep.subr.mxu0 0.0
    %1886 = vmatpush1.msra.mxu0 0.0
    %1887 = vmatprep.subr.mxu0 0.0
    %1888 = vmatpush1.msra.mxu0 0.0
    %1889 = vmatprep.subr.mxu0 0.0
    %1890 = vmatpush1.msra.mxu0 0.0
    %1891 = vmatprep.subr.mxu0 0.0
    %1892 = vmatpush1.msra.mxu0 0.0
    %1893 = vmatprep.subr.mxu0 0.0
    %1894 = vmatpush1.msra.mxu0 0.0
    %1895 = vmatprep.subr.mxu0 0.0
    %1896 = vmatpush1.msra.mxu0 0.0
    %1897 = vmatprep.subr.mxu0 0.0
    %1898 = vmatpush1.msra.mxu0 0.0
    %1899 = vmatprep.subr.mxu0 0.0
    %1900 = vmatpush1.msra.mxu0 0.0
    %1901 = vmatprep.mubr.f32.mxu0 0.0
    %1902 = vmatmul.mubr.f32.gmra.mrb[0].mxu0 %v1802
    %v1903 = vpop.f32.mrb[0].mxu0
    %v1904 = vadd.f32 0.0, %v1903
    %v1905 = vpop.f32.mrb[0].mxu0
    %1906 = vdwg.mxu0
    %1907 = vmatprep.subr.mxu0 0.0
    %1908 = vmatpush1.msra.mxu0 %v1805
    %1909 = vmatprep.subr.mxu0 0.0
    %1910 = vmatpush1.msra.mxu0 %v1806
    %1911 = vmatprep.subr.mxu0 0.0
    %1912 = vmatpush1.msra.mxu0 %v1807
    %1913 = vmatprep.subr.mxu0 0.0
    %1914 = vmatpush1.msra.mxu0 %v1808
    %1915 = vmatprep.subr.mxu0 0.0
    %1916 = vmatpush1.msra.mxu0 %v1809
    %1917 = vmatprep.subr.mxu0 0.0
    %1918 = vmatpush1.msra.mxu0 %v1810
    %1919 = vmatprep.subr.mxu0 0.0
    %1920 = vmatpush1.msra.mxu0 %v1811
    %1921 = vmatprep.subr.mxu0 0.0
    %1922 = vmatpush1.msra.mxu0 %v1812
    %1923 = vmatprep.subr.mxu0 0.0
    %1924 = vmatpush1.msra.mxu0 %v1813
    %1925 = vmatprep.subr.mxu0 0.0
    %1926 = vmatpush1.msra.mxu0 %v1814
    %1927 = vmatprep.subr.mxu0 0.0
    %1928 = vmatpush1.msra.mxu0 %v1815
    %1929 = vmatprep.subr.mxu0 0.0
    %1930 = vmatpush1.msra.mxu0 %v1816
    %1931 = vmatprep.subr.mxu0 0.0
    %1932 = vmatpush1.msra.mxu0 %v1817
    %1933 = vmatprep.subr.mxu0 0.0
    %1934 = vmatpush1.msra.mxu0 %v1818
    %1935 = vmatprep.subr.mxu0 0.0
    %1936 = vmatpush1.msra.mxu0 %v1819
    %1937 = vmatprep.subr.mxu0 0.0
    %1938 = vmatpush1.msra.mxu0 %v1820
    %1939 = vmatprep.subr.mxu0 0.0
    %1940 = vmatpush1.msra.mxu0 0.0
    %1941 = vmatprep.subr.mxu0 0.0
    %1942 = vmatpush1.msra.mxu0 0.0
    %1943 = vmatprep.subr.mxu0 0.0
    %1944 = vmatpush1.msra.mxu0 0.0
    %1945 = vmatprep.subr.mxu0 0.0
    %1946 = vmatpush1.msra.mxu0 0.0
    %1947 = vmatprep.subr.mxu0 0.0
    %1948 = vmatpush1.msra.mxu0 0.0
    %1949 = vmatprep.subr.mxu0 0.0
    %1950 = vmatpush1.msra.mxu0 0.0
    %1951 = vmatprep.subr.mxu0 0.0
    %1952 = vmatpush1.msra.mxu0 0.0
    %1953 = vmatprep.subr.mxu0 0.0
    %1954 = vmatpush1.msra.mxu0 0.0
    %1955 = vmatprep.subr.mxu0 0.0
    %1956 = vmatpush1.msra.mxu0 0.0
    %1957 = vmatprep.subr.mxu0 0.0
    %1958 = vmatpush1.msra.mxu0 0.0
    %1959 = vmatprep.subr.mxu0 0.0
    %1960 = vmatpush1.msra.mxu0 0.0
    %1961 = vmatprep.subr.mxu0 0.0
    %1962 = vmatpush1.msra.mxu0 0.0
    %1963 = vmatprep.subr.mxu0 0.0
    %1964 = vmatpush1.msra.mxu0 0.0
    %1965 = vmatprep.subr.mxu0 0.0
    %1966 = vmatpush1.msra.mxu0 0.0
    %1967 = vmatprep.subr.mxu0 0.0
    %1968 = vmatpush1.msra.mxu0 0.0
    %1969 = vmatprep.subr.mxu0 0.0
    %1970 = vmatpush1.msra.mxu0 0.0
    %1971 = vmatprep.mubr.f32.mxu0 0.0
    %1972 = vmatmul.mubr.f32.gmra.mrb[0].mxu0 %v1728
    %v1973 = vpop.f32.mrb[0].mxu0
    %v1974 = vadd.f32 %v1904, %v1973
    %v1975 = vpop.f32.mrb[0].mxu0
    %1976 = vdwg.mxu0
    %1977 = vst [vmem:[#allocation11] sm:$0xff] %v1974
    // Predicated region
    $region90: #{tpu_custom_call.1} parent=1 // pred_check
      _
    $region91: #{tpu_custom_call.1} parent=1 // pred_check_branch
      %1979 = sbr.rel (0) target = $region93
    $region92: #{tpu_custom_call.1} parent=1 // pred_region
      %s1981 = ssub.s32 128, 128
      %1982 = vsyncadd [#allocation4], %s1981
      %s1984 = sshll.u32 [#allocation11], 4
      %s1985 = int_to_ptr.vmem [resolvable:$true] %s1984
      %1987 = dma.vmem_to_hbm [thread:$0]  %s1985, 128, %s17, [#allocation4]
    $region93: #{tpu_custom_call.1} parent=1 // pred_fallthru
      _
    // Predicated region
    $region94: #{tpu_custom_call.1} parent=1 // pred_check
      _
    $region95: #{tpu_custom_call.1} parent=1 // pred_check_branch
      %1989 = sbr.rel (0) target = $region97
    $region96: #{tpu_custom_call.1} parent=1 // pred_region
      %1990 = dma.done [#allocation4], 128
    $region97: #{tpu_custom_call.1} parent=1 // pred_fallthru
      _
    %1991 = vsyncpa [#allocation3], 1
    %1992 = vsyncpa [#allocation6], 1
    %1993 = vsyncpa [#allocation9], 1
    %1994 = vsyncpa [#allocation4], 1

</llo_original>
